<compile_context>
chip_gen: v7x
topology: tpu7x:2x2x1
jax: 0.10.0
libtpu: 0.0.40
codegen_flags: <defaults>
</compile_context>

<pallas_src>
import functools

import jax
import jax.numpy as jnp
from jax import lax
from jax.experimental import pallas as pl
from jax.experimental.pallas import tpu as pltpu  # noqa: F401  (not needed: grid-free calls)

BN_EPS = 1e-5                 # torch BatchNorm2d default
MXU_DTYPE = jnp.bfloat16      # matmul operand dtype (f32 accumulation kept)


# --------------------------- Pallas kernels ---------------------------------

def _conv_bn_relu_kernel(p_ref, w_ref, g_ref, b_ref, o_ref, *, eps):
    """Fused im2col-matmul + training-mode BatchNorm (batch stats) + ReLU.

    Single block: the whole (M, K) patch matrix, (K, Cout) weight and (M, Cout)
    output live in VMEM, so the batch statistics are computed in-kernel with no
    extra HBM passes. Conv bias is omitted (exactly cancelled by the BN).
    """
    y = jnp.dot(p_ref[...], w_ref[...], preferred_element_type=jnp.float32)  # (M, Cout) f32
    m = y.shape[0]
    mean = jnp.sum(y, axis=0, keepdims=True) * (1.0 / m)                      # (1, Cout)
    var = jnp.sum(jnp.square(y - mean), axis=0, keepdims=True) * (1.0 / m)    # biased var
    scale = g_ref[...] * lax.rsqrt(var + eps)
    shift = b_ref[...] - mean * scale
    o_ref[...] = jnp.maximum(y * scale + shift, 0.0)


def _matmul_bias_kernel(x_ref, w_ref, b_ref, o_ref):
    """y = x @ w + b for the deconv1-3 branches (bias kept: no BN follows)."""
    o_ref[...] = (
        jnp.dot(x_ref[...], w_ref[...], preferred_element_type=jnp.float32)
        + b_ref[...]
    )


def _deconv_bn_relu_kernel(x_ref, w_ref, g_ref, b_ref, gsum_ref, gbcast_ref,
                           o_ref, *, eps):
    """Fused deconv-matmul + training-mode BatchNorm + ReLU (deconv4 + bn4).

    Matmul output columns are ordered (kh, kw, cout). gsum (k*k*Cout, Cout) sums
    the k*k column groups per channel; gbcast (Cout, k*k*Cout) tiles per-channel
    scale/shift back across the groups. The batch statistics are identical to
    those over the final (N*Hout*Wout, Cout) layout because the pixel shuffle only
    permutes spatial positions within each channel. Bias omitted (cancelled by BN).
    """
    y = jnp.dot(x_ref[...], w_ref[...], preferred_element_type=jnp.float32)  # (M, G*Cout)
    m = y.shape[0]
    groups = y.shape[1] // g_ref.shape[1]
    total = m * groups

    col_sum = jnp.sum(y, axis=0, keepdims=True)                              # (1, G*Cout)
    mean = jnp.dot(col_sum, gsum_ref[...],
                   preferred_element_type=jnp.float32) * (1.0 / total)        # (1, Cout)
    mean_full = jnp.dot(mean, gbcast_ref[...],
                        preferred_element_type=jnp.float32)                   # (1, G*Cout)
    d = y - mean_full
    var = jnp.dot(jnp.sum(d * d, axis=0, keepdims=True), gsum_ref[...],
                  preferred_element_type=jnp.float32) * (1.0 / total)         # (1, Cout)

    scale = g_ref[...] * lax.rsqrt(var + eps)
    shift = b_ref[...] - mean * scale
    scale_full = jnp.dot(scale, gbcast_ref[...], preferred_element_type=jnp.float32)
    shift_full = jnp.dot(shift, gbcast_ref[...], preferred_element_type=jnp.float32)
    o_ref[...] = jnp.maximum(y * scale_full + shift_full, 0.0)


# --------------------------- layer wrappers ----------------------------------

def conv_bn_relu(x_nhwc, w, gamma, beta):
    """Conv2d(k=3, s=2, p=1) -> BatchNorm2d(batch stats) -> ReLU, one pallas_call."""
    N, H, W, Cin = x_nhwc.shape
    Cout, _, k, _ = w.shape
    # Patch columns ordered (cin, kh, kw) channel-outermost -> matches w.reshape(Cout, -1).
    patches = lax.conv_general_dilated_patches(
        x_nhwc, (k, k), (2, 2), ((1, 1), (1, 1)),
        dimension_numbers=("NHWC", "HWIO", "NHWC"))
    _, Ho, Wo, K = patches.shape
    p2d = patches.reshape(N * Ho * Wo, K).astype(MXU_DTYPE)
    wmat = w.reshape(Cout, K).T.astype(MXU_DTYPE)
    out = pl.pallas_call(
        functools.partial(_conv_bn_relu_kernel, eps=BN_EPS),
        out_shape=jax.ShapeDtypeStruct((N * Ho * Wo, Cout), jnp.float32),
    )(p2d, wmat, gamma.reshape(1, Cout), beta.reshape(1, Cout))
    return out.reshape(N, Ho, Wo, Cout)


def _pixel_shuffle(y, N, H, W, k, Cout, pad_hw):
    """(N*H*W, k*k*Cout) matmul output -> (N, H*k - 2ph, W*k - 2pw, Cout)."""
    y = y.reshape(N, H, W, k, k, Cout)
    y = jnp.transpose(y, (0, 1, 3, 2, 4, 5)).reshape(N, H * k, W * k, Cout)
    ph, pw = pad_hw                               # ConvTranspose "padding" crops output
    if ph:
        y = y[:, ph:-ph, :, :]
    if pw:
        y = y[:, :, pw:-pw, :]
    return y


def deconv(x_nhwc, w, b, k, pad_hw):
    """ConvTranspose2d with kernel == stride: one matmul+bias kernel + pixel shuffle."""
    N, H, W, Cin = x_nhwc.shape
    Cout = w.shape[1]                                      # torch weight: (Cin, Cout, k, k)
    wmat = jnp.transpose(w, (0, 2, 3, 1)).reshape(Cin, k * k * Cout)
    bvec = jnp.tile(b, k * k).reshape(1, k * k * Cout)     # bias per (kh, kw, cout) column
    y = pl.pallas_call(
        _matmul_bias_kernel,
        out_shape=jax.ShapeDtypeStruct((N * H * W, k * k * Cout), jnp.float32),
    )(x_nhwc.reshape(N * H * W, Cin).astype(MXU_DTYPE), wmat.astype(MXU_DTYPE), bvec)
    return _pixel_shuffle(y, N, H, W, k, Cout, pad_hw)


def deconv_bn_relu(x_nhwc, w, gamma, beta, k):
    """ConvTranspose2d(k == stride) -> BatchNorm2d(batch stats) -> ReLU, one fused kernel."""
    N, H, W, Cin = x_nhwc.shape
    Cout = w.shape[1]
    wmat = jnp.transpose(w, (0, 2, 3, 1)).reshape(Cin, k * k * Cout)
    eye = jnp.eye(Cout, dtype=jnp.float32)
    gsum = jnp.tile(eye, (k * k, 1))                       # (k*k*Cout, Cout): group-sum
    gbcast = jnp.tile(eye, (1, k * k))                     # (Cout, k*k*Cout): broadcast back
    y = pl.pallas_call(
        functools.partial(_deconv_bn_relu_kernel, eps=BN_EPS),
        out_shape=jax.ShapeDtypeStruct((N * H * W, k * k * Cout), jnp.float32),
    )(x_nhwc.reshape(N * H * W, Cin).astype(MXU_DTYPE), wmat.astype(MXU_DTYPE),
      gamma.reshape(1, Cout), beta.reshape(1, Cout), gsum, gbcast)
    return _pixel_shuffle(y, N, H, W, k, Cout, pad_hw=(0, 0))


# --------------------------- parameters & forward -----------------------------

def init_params(C, key):
    keys = jax.random.split(key, 14)

    def rnd(k, shape):
        return jax.random.normal(k, shape, jnp.float32) * 0.1

    # Note: conv1-3 biases and deconv4 bias are kept for module parity but are NOT
    # applied in the forward pass - training-mode BatchNorm with batch statistics
    # cancels any pre-BN per-channel bias exactly.
    return {
        "conv1_w": rnd(keys[0], (C, C, 3, 3)),         "conv1_b": rnd(keys[1], (C,)),
        "conv2_w": rnd(keys[2], (2 * C, C, 3, 3)),     "conv2_b": rnd(keys[3], (2 * C,)),
        "conv3_w": rnd(keys[4], (4 * C, 2 * C, 3, 3)), "conv3_b": rnd(keys[5], (4 * C,)),
        "deconv1_w": rnd(keys[6], (C, 2 * C, 1, 1)),     "deconv1_b": rnd(keys[7], (2 * C,)),
        "deconv2_w": rnd(keys[8], (2 * C, 2 * C, 2, 2)), "deconv2_b": rnd(keys[9], (2 * C,)),
        "deconv3_w": rnd(keys[10], (4 * C, 2 * C, 4, 4)), "deconv3_b": rnd(keys[11], (2 * C,)),
        "deconv4_w": rnd(keys[12], (6 * C, 6 * C, 2, 2)), "deconv4_b": rnd(keys[13], (6 * C,)),
        # BatchNorm2d default init: weight = 1, bias = 0
        "bn1_g": jnp.ones((C,), jnp.float32),      "bn1_b": jnp.zeros((C,), jnp.float32),
        "bn2_g": jnp.ones((2 * C,), jnp.float32),  "bn2_b": jnp.zeros((2 * C,), jnp.float32),
        "bn3_g": jnp.ones((4 * C,), jnp.float32),  "bn3_b": jnp.zeros((4 * C,), jnp.float32),
        "bn4_g": jnp.ones((6 * C,), jnp.float32),  "bn4_b": jnp.zeros((6 * C,), jnp.float32),
    }


def radar_block_forward(params, x_nchw):
    x = jnp.transpose(x_nchw, (0, 2, 3, 1)).astype(jnp.float32)   # NCHW -> NHWC

    f1 = conv_bn_relu(x,  params["conv1_w"], params["bn1_g"], params["bn1_b"])
    f2 = conv_bn_relu(f1, params["conv2_w"], params["bn2_g"], params["bn2_b"])
    f3 = conv_bn_relu(f2, params["conv3_w"], params["bn3_g"], params["bn3_b"])

    d1 = deconv(f1, params["deconv1_w"], params["deconv1_b"], k=1, pad_hw=(0, 0))
    d2 = deconv(f2, params["deconv2_w"], params["deconv2_b"], k=2, pad_hw=(0, 0))
    d3 = deconv(f3, params["deconv3_w"], params["deconv3_b"], k=4, pad_hw=(0, 1))

    # torch.cat(..., dim=1) == channel concat (last axis in NHWC)
    cat = jnp.concatenate([d1, d2, d3], axis=-1)

    out = deconv_bn_relu(cat, params["deconv4_w"], params["bn4_g"], params["bn4_b"], k=2)
    # NHWC -> NCHW to match the PyTorch module output
    return jnp.transpose(out, (0, 3, 1, 2))


if __name__ == "__main__":
    key = jax.random.PRNGKey(0)
    k_x, k_p = jax.random.split(key)

    # Spatial sizes must satisfy H % 8 == 0 and W % 8 == 4 so the three deconv
    # branches share a spatial shape at the concat (same constraint as the torch module).
    N, C, H, W = 2, 4, 16, 12
    x = jax.random.normal(k_x, (N, C, H, W), jnp.float32)
    params = init_params(C, k_p)

    fwd = jax.jit(functools.partial(radar_block_forward, params))
    out = jax.block_until_ready(fwd(x))
    assert out.shape == (N, 6 * C, H, W), out.shape
    print("KERNEL_OK")
</pallas_src>

<mosaic_0001>
module attributes {stable_mosaic.version = 11 : i64} {
  func.func @_conv_bn_relu_kernel(%arg0: memref<96x36xbf16, #tpu.memory_space<vmem>>, %arg1: memref<36x4xbf16, #tpu.memory_space<vmem>>, %arg2: memref<1x4xf32, #tpu.memory_space<vmem>>, %arg3: memref<1x4xf32, #tpu.memory_space<vmem>>, %arg4: memref<96x4xf32, #tpu.memory_space<vmem>>) attributes {dimension_semantics = [], scalar_prefetch = 0 : i64, scratch_operands = 0 : i64, tpu.core_type = #tpu.core_type<tc>} {
    %c0 = arith.constant 0 : index
    %c0_0 = arith.constant 0 : index
    %0 = vector.load %arg0[%c0, %c0_0] : memref<96x36xbf16, #tpu.memory_space<vmem>>, vector<96x36xbf16>
    %c0_1 = arith.constant 0 : index
    %c0_2 = arith.constant 0 : index
    %1 = vector.load %arg1[%c0_1, %c0_2] : memref<36x4xbf16, #tpu.memory_space<vmem>>, vector<36x4xbf16>
    %cst = arith.constant dense<0.000000e+00> : vector<96x4xf32>
    %2 = tpu.matmul %0, %1, %cst {dimension_numbers = #tpu.dot_dimension_numbers<[1], [0], [0], [1], [0, 0, 1, 1], [], []>} : vector<96x36xbf16>, vector<36x4xbf16>, vector<96x4xf32> -> vector<96x4xf32>
    %cst_3 = arith.constant dense<0.000000e+00> : vector<4xf32>
    %3 = vector.multi_reduction <add>, %2, %cst_3 [0] : vector<96x4xf32> to vector<4xf32>
    %4 = vector.shape_cast %3 : vector<4xf32> to vector<1x4xf32>
    %cst_4 = arith.constant 0.010416667 : f32
    %5 = vector.broadcast %cst_4 : f32 to vector<1x4xf32>
    %6 = arith.mulf %4, %5 : vector<1x4xf32>
    %7 = vector.broadcast %6 : vector<1x4xf32> to vector<96x4xf32>
    %8 = arith.subf %2, %7 : vector<96x4xf32>
    %9 = arith.mulf %8, %8 : vector<96x4xf32>
    %cst_5 = arith.constant dense<0.000000e+00> : vector<4xf32>
    %10 = vector.multi_reduction <add>, %9, %cst_5 [0] : vector<96x4xf32> to vector<4xf32>
    %11 = vector.shape_cast %10 : vector<4xf32> to vector<1x4xf32>
    %cst_6 = arith.constant 0.010416667 : f32
    %12 = vector.broadcast %cst_6 : f32 to vector<1x4xf32>
    %13 = arith.mulf %11, %12 : vector<1x4xf32>
    %c0_7 = arith.constant 0 : index
    %c0_8 = arith.constant 0 : index
    %14 = vector.load %arg2[%c0_7, %c0_8] : memref<1x4xf32, #tpu.memory_space<vmem>>, vector<1x4xf32>
    %cst_9 = arith.constant 9.99999974E-6 : f32
    %15 = vector.broadcast %cst_9 : f32 to vector<1x4xf32>
    %16 = arith.addf %13, %15 : vector<1x4xf32>
    %17 = math.rsqrt %16 : vector<1x4xf32>
    %18 = arith.mulf %14, %17 : vector<1x4xf32>
    %c0_10 = arith.constant 0 : index
    %c0_11 = arith.constant 0 : index
    %19 = vector.load %arg3[%c0_10, %c0_11] : memref<1x4xf32, #tpu.memory_space<vmem>>, vector<1x4xf32>
    %20 = arith.mulf %6, %18 : vector<1x4xf32>
    %21 = arith.subf %19, %20 : vector<1x4xf32>
    %22 = vector.broadcast %18 : vector<1x4xf32> to vector<96x4xf32>
    %23 = arith.mulf %2, %22 : vector<96x4xf32>
    %24 = vector.broadcast %21 : vector<1x4xf32> to vector<96x4xf32>
    %25 = arith.addf %23, %24 : vector<96x4xf32>
    %cst_12 = arith.constant 0.000000e+00 : f32
    %26 = vector.broadcast %cst_12 : f32 to vector<96x4xf32>
    %27 = arith.maximumf %25, %26 : vector<96x4xf32>
    %c0_13 = arith.constant 0 : index
    %c0_14 = arith.constant 0 : index
    %28 = vector.load %arg4[%c0_13, %c0_14] : memref<96x4xf32, #tpu.memory_space<vmem>>, vector<96x4xf32>
    tpu.vector_store %arg4[%c0_13, %c0_14], %27 {strides = array<i32>} : memref<96x4xf32, #tpu.memory_space<vmem>>, vector<96x4xf32>,
    return
  }
}

module attributes {stable_mosaic.version = 11 : i64} {
  func.func @_conv_bn_relu_kernel(%arg0: memref<24x36xbf16, #tpu.memory_space<vmem>>, %arg1: memref<36x8xbf16, #tpu.memory_space<vmem>>, %arg2: memref<1x8xf32, #tpu.memory_space<vmem>>, %arg3: memref<1x8xf32, #tpu.memory_space<vmem>>, %arg4: memref<24x8xf32, #tpu.memory_space<vmem>>) attributes {dimension_semantics = [], scalar_prefetch = 0 : i64, scratch_operands = 0 : i64, tpu.core_type = #tpu.core_type<tc>} {
    %c0 = arith.constant 0 : index
    %c0_0 = arith.constant 0 : index
    %0 = vector.load %arg0[%c0, %c0_0] : memref<24x36xbf16, #tpu.memory_space<vmem>>, vector<24x36xbf16>
    %c0_1 = arith.constant 0 : index
    %c0_2 = arith.constant 0 : index
    %1 = vector.load %arg1[%c0_1, %c0_2] : memref<36x8xbf16, #tpu.memory_space<vmem>>, vector<36x8xbf16>
    %cst = arith.constant dense<0.000000e+00> : vector<24x8xf32>
    %2 = tpu.matmul %0, %1, %cst {dimension_numbers = #tpu.dot_dimension_numbers<[1], [0], [0], [1], [0, 0, 1, 1], [], []>} : vector<24x36xbf16>, vector<36x8xbf16>, vector<24x8xf32> -> vector<24x8xf32>
    %cst_3 = arith.constant dense<0.000000e+00> : vector<8xf32>
    %3 = vector.multi_reduction <add>, %2, %cst_3 [0] : vector<24x8xf32> to vector<8xf32>
    %4 = vector.shape_cast %3 : vector<8xf32> to vector<1x8xf32>
    %cst_4 = arith.constant 0.0416666679 : f32
    %5 = vector.broadcast %cst_4 : f32 to vector<1x8xf32>
    %6 = arith.mulf %4, %5 : vector<1x8xf32>
    %7 = vector.broadcast %6 : vector<1x8xf32> to vector<24x8xf32>
    %8 = arith.subf %2, %7 : vector<24x8xf32>
    %9 = arith.mulf %8, %8 : vector<24x8xf32>
    %cst_5 = arith.constant dense<0.000000e+00> : vector<8xf32>
    %10 = vector.multi_reduction <add>, %9, %cst_5 [0] : vector<24x8xf32> to vector<8xf32>
    %11 = vector.shape_cast %10 : vector<8xf32> to vector<1x8xf32>
    %cst_6 = arith.constant 0.0416666679 : f32
    %12 = vector.broadcast %cst_6 : f32 to vector<1x8xf32>
    %13 = arith.mulf %11, %12 : vector<1x8xf32>
    %c0_7 = arith.constant 0 : index
    %c0_8 = arith.constant 0 : index
    %14 = vector.load %arg2[%c0_7, %c0_8] : memref<1x8xf32, #tpu.memory_space<vmem>>, vector<1x8xf32>
    %cst_9 = arith.constant 9.99999974E-6 : f32
    %15 = vector.broadcast %cst_9 : f32 to vector<1x8xf32>
    %16 = arith.addf %13, %15 : vector<1x8xf32>
    %17 = math.rsqrt %16 : vector<1x8xf32>
    %18 = arith.mulf %14, %17 : vector<1x8xf32>
    %c0_10 = arith.constant 0 : index
    %c0_11 = arith.constant 0 : index
    %19 = vector.load %arg3[%c0_10, %c0_11] : memref<1x8xf32, #tpu.memory_space<vmem>>, vector<1x8xf32>
    %20 = arith.mulf %6, %18 : vector<1x8xf32>
    %21 = arith.subf %19, %20 : vector<1x8xf32>
    %22 = vector.broadcast %18 : vector<1x8xf32> to vector<24x8xf32>
    %23 = arith.mulf %2, %22 : vector<24x8xf32>
    %24 = vector.broadcast %21 : vector<1x8xf32> to vector<24x8xf32>
    %25 = arith.addf %23, %24 : vector<24x8xf32>
    %cst_12 = arith.constant 0.000000e+00 : f32
    %26 = vector.broadcast %cst_12 : f32 to vector<24x8xf32>
    %27 = arith.maximumf %25, %26 : vector<24x8xf32>
    %c0_13 = arith.constant 0 : index
    %c0_14 = arith.constant 0 : index
    %28 = vector.load %arg4[%c0_13, %c0_14] : memref<24x8xf32, #tpu.memory_space<vmem>>, vector<24x8xf32>
    tpu.vector_store %arg4[%c0_13, %c0_14], %27 {strides = array<i32>} : memref<24x8xf32, #tpu.memory_space<vmem>>, vector<24x8xf32>,
    return
  }
}

module attributes {stable_mosaic.version = 11 : i64} {
  func.func @_conv_bn_relu_kernel(%arg0: memref<8x72xbf16, #tpu.memory_space<vmem>>, %arg1: memref<72x16xbf16, #tpu.memory_space<vmem>>, %arg2: memref<1x16xf32, #tpu.memory_space<vmem>>, %arg3: memref<1x16xf32, #tpu.memory_space<vmem>>, %arg4: memref<8x16xf32, #tpu.memory_space<vmem>>) attributes {dimension_semantics = [], scalar_prefetch = 0 : i64, scratch_operands = 0 : i64, tpu.core_type = #tpu.core_type<tc>} {
    %c0 = arith.constant 0 : index
    %c0_0 = arith.constant 0 : index
    %0 = vector.load %arg0[%c0, %c0_0] : memref<8x72xbf16, #tpu.memory_space<vmem>>, vector<8x72xbf16>
    %c0_1 = arith.constant 0 : index
    %c0_2 = arith.constant 0 : index
    %1 = vector.load %arg1[%c0_1, %c0_2] : memref<72x16xbf16, #tpu.memory_space<vmem>>, vector<72x16xbf16>
    %cst = arith.constant dense<0.000000e+00> : vector<8x16xf32>
    %2 = tpu.matmul %0, %1, %cst {dimension_numbers = #tpu.dot_dimension_numbers<[1], [0], [0], [1], [0, 0, 1, 1], [], []>} : vector<8x72xbf16>, vector<72x16xbf16>, vector<8x16xf32> -> vector<8x16xf32>
    %cst_3 = arith.constant dense<0.000000e+00> : vector<16xf32>
    %3 = vector.multi_reduction <add>, %2, %cst_3 [0] : vector<8x16xf32> to vector<16xf32>
    %4 = vector.shape_cast %3 : vector<16xf32> to vector<1x16xf32>
    %cst_4 = arith.constant 1.250000e-01 : f32
    %5 = vector.broadcast %cst_4 : f32 to vector<1x16xf32>
    %6 = arith.mulf %4, %5 : vector<1x16xf32>
    %7 = vector.broadcast %6 : vector<1x16xf32> to vector<8x16xf32>
    %8 = arith.subf %2, %7 : vector<8x16xf32>
    %9 = arith.mulf %8, %8 : vector<8x16xf32>
    %cst_5 = arith.constant dense<0.000000e+00> : vector<16xf32>
    %10 = vector.multi_reduction <add>, %9, %cst_5 [0] : vector<8x16xf32> to vector<16xf32>
    %11 = vector.shape_cast %10 : vector<16xf32> to vector<1x16xf32>
    %cst_6 = arith.constant 1.250000e-01 : f32
    %12 = vector.broadcast %cst_6 : f32 to vector<1x16xf32>
    %13 = arith.mulf %11, %12 : vector<1x16xf32>
    %c0_7 = arith.constant 0 : index
    %c0_8 = arith.constant 0 : index
    %14 = vector.load %arg2[%c0_7, %c0_8] : memref<1x16xf32, #tpu.memory_space<vmem>>, vector<1x16xf32>
    %cst_9 = arith.constant 9.99999974E-6 : f32
    %15 = vector.broadcast %cst_9 : f32 to vector<1x16xf32>
    %16 = arith.addf %13, %15 : vector<1x16xf32>
    %17 = math.rsqrt %16 : vector<1x16xf32>
    %18 = arith.mulf %14, %17 : vector<1x16xf32>
    %c0_10 = arith.constant 0 : index
    %c0_11 = arith.constant 0 : index
    %19 = vector.load %arg3[%c0_10, %c0_11] : memref<1x16xf32, #tpu.memory_space<vmem>>, vector<1x16xf32>
    %20 = arith.mulf %6, %18 : vector<1x16xf32>
    %21 = arith.subf %19, %20 : vector<1x16xf32>
    %22 = vector.broadcast %18 : vector<1x16xf32> to vector<8x16xf32>
    %23 = arith.mulf %2, %22 : vector<8x16xf32>
    %24 = vector.broadcast %21 : vector<1x16xf32> to vector<8x16xf32>
    %25 = arith.addf %23, %24 : vector<8x16xf32>
    %cst_12 = arith.constant 0.000000e+00 : f32
    %26 = vector.broadcast %cst_12 : f32 to vector<8x16xf32>
    %27 = arith.maximumf %25, %26 : vector<8x16xf32>
    %c0_13 = arith.constant 0 : index
    %c0_14 = arith.constant 0 : index
    %28 = vector.load %arg4[%c0_13, %c0_14] : memref<8x16xf32, #tpu.memory_space<vmem>>, vector<8x16xf32>
    tpu.vector_store %arg4[%c0_13, %c0_14], %27 {strides = array<i32>} : memref<8x16xf32, #tpu.memory_space<vmem>>, vector<8x16xf32>,
    return
  }
}

module attributes {stable_mosaic.version = 11 : i64} {
  func.func @_matmul_bias_kernel(%arg0: memref<8x16xbf16, #tpu.memory_space<vmem>>, %arg1: memref<16x128xbf16, #tpu.memory_space<vmem>>, %arg2: memref<1x128xf32, #tpu.memory_space<vmem>>, %arg3: memref<8x128xf32, #tpu.memory_space<vmem>>) attributes {dimension_semantics = [], scalar_prefetch = 0 : i64, scratch_operands = 0 : i64, tpu.core_type = #tpu.core_type<tc>} {
    %c0 = arith.constant 0 : index
    %c0_0 = arith.constant 0 : index
    %0 = vector.load %arg0[%c0, %c0_0] : memref<8x16xbf16, #tpu.memory_space<vmem>>, vector<8x16xbf16>
    %c0_1 = arith.constant 0 : index
    %c0_2 = arith.constant 0 : index
    %1 = vector.load %arg1[%c0_1, %c0_2] : memref<16x128xbf16, #tpu.memory_space<vmem>>, vector<16x128xbf16>
    %cst = arith.constant dense<0.000000e+00> : vector<8x128xf32>
    %2 = tpu.matmul %0, %1, %cst {dimension_numbers = #tpu.dot_dimension_numbers<[1], [0], [0], [1], [0, 0, 1, 1], [], []>} : vector<8x16xbf16>, vector<16x128xbf16>, vector<8x128xf32> -> vector<8x128xf32>
    %c0_3 = arith.constant 0 : index
    %c0_4 = arith.constant 0 : index
    %3 = vector.load %arg2[%c0_3, %c0_4] : memref<1x128xf32, #tpu.memory_space<vmem>>, vector<1x128xf32>
    %4 = vector.broadcast %3 : vector<1x128xf32> to vector<8x128xf32>
    %5 = arith.addf %2, %4 : vector<8x128xf32>
    %c0_5 = arith.constant 0 : index
    %c0_6 = arith.constant 0 : index
    %6 = vector.load %arg3[%c0_5, %c0_6] : memref<8x128xf32, #tpu.memory_space<vmem>>, vector<8x128xf32>
    tpu.vector_store %arg3[%c0_5, %c0_6], %5 {strides = array<i32>} : memref<8x128xf32, #tpu.memory_space<vmem>>, vector<8x128xf32>,
    return
  }
}

module attributes {stable_mosaic.version = 11 : i64} {
  func.func @_matmul_bias_kernel(%arg0: memref<24x8xbf16, #tpu.memory_space<vmem>>, %arg1: memref<8x32xbf16, #tpu.memory_space<vmem>>, %arg2: memref<1x32xf32, #tpu.memory_space<vmem>>, %arg3: memref<24x32xf32, #tpu.memory_space<vmem>>) attributes {dimension_semantics = [], scalar_prefetch = 0 : i64, scratch_operands = 0 : i64, tpu.core_type = #tpu.core_type<tc>} {
    %c0 = arith.constant 0 : index
    %c0_0 = arith.constant 0 : index
    %0 = vector.load %arg0[%c0, %c0_0] : memref<24x8xbf16, #tpu.memory_space<vmem>>, vector<24x8xbf16>
    %c0_1 = arith.constant 0 : index
    %c0_2 = arith.constant 0 : index
    %1 = vector.load %arg1[%c0_1, %c0_2] : memref<8x32xbf16, #tpu.memory_space<vmem>>, vector<8x32xbf16>
    %cst = arith.constant dense<0.000000e+00> : vector<24x32xf32>
    %2 = tpu.matmul %0, %1, %cst {dimension_numbers = #tpu.dot_dimension_numbers<[1], [0], [0], [1], [0, 0, 1, 1], [], []>} : vector<24x8xbf16>, vector<8x32xbf16>, vector<24x32xf32> -> vector<24x32xf32>
    %c0_3 = arith.constant 0 : index
    %c0_4 = arith.constant 0 : index
    %3 = vector.load %arg2[%c0_3, %c0_4] : memref<1x32xf32, #tpu.memory_space<vmem>>, vector<1x32xf32>
    %4 = vector.broadcast %3 : vector<1x32xf32> to vector<24x32xf32>
    %5 = arith.addf %2, %4 : vector<24x32xf32>
    %c0_5 = arith.constant 0 : index
    %c0_6 = arith.constant 0 : index
    %6 = vector.load %arg3[%c0_5, %c0_6] : memref<24x32xf32, #tpu.memory_space<vmem>>, vector<24x32xf32>
    tpu.vector_store %arg3[%c0_5, %c0_6], %5 {strides = array<i32>} : memref<24x32xf32, #tpu.memory_space<vmem>>, vector<24x32xf32>,
    return
  }
}

module attributes {stable_mosaic.version = 11 : i64} {
  func.func @_matmul_bias_kernel(%arg0: memref<96x4xbf16, #tpu.memory_space<vmem>>, %arg1: memref<4x8xbf16, #tpu.memory_space<vmem>>, %arg2: memref<1x8xf32, #tpu.memory_space<vmem>>, %arg3: memref<96x8xf32, #tpu.memory_space<vmem>>) attributes {dimension_semantics = [], scalar_prefetch = 0 : i64, scratch_operands = 0 : i64, tpu.core_type = #tpu.core_type<tc>} {
    %c0 = arith.constant 0 : index
    %c0_0 = arith.constant 0 : index
    %0 = vector.load %arg0[%c0, %c0_0] : memref<96x4xbf16, #tpu.memory_space<vmem>>, vector<96x4xbf16>
    %c0_1 = arith.constant 0 : index
    %c0_2 = arith.constant 0 : index
    %1 = vector.load %arg1[%c0_1, %c0_2] : memref<4x8xbf16, #tpu.memory_space<vmem>>, vector<4x8xbf16>
    %cst = arith.constant dense<0.000000e+00> : vector<96x8xf32>
    %2 = tpu.matmul %0, %1, %cst {dimension_numbers = #tpu.dot_dimension_numbers<[1], [0], [0], [1], [0, 0, 1, 1], [], []>} : vector<96x4xbf16>, vector<4x8xbf16>, vector<96x8xf32> -> vector<96x8xf32>
    %c0_3 = arith.constant 0 : index
    %c0_4 = arith.constant 0 : index
    %3 = vector.load %arg2[%c0_3, %c0_4] : memref<1x8xf32, #tpu.memory_space<vmem>>, vector<1x8xf32>
    %4 = vector.broadcast %3 : vector<1x8xf32> to vector<96x8xf32>
    %5 = arith.addf %2, %4 : vector<96x8xf32>
    %c0_5 = arith.constant 0 : index
    %c0_6 = arith.constant 0 : index
    %6 = vector.load %arg3[%c0_5, %c0_6] : memref<96x8xf32, #tpu.memory_space<vmem>>, vector<96x8xf32>
    tpu.vector_store %arg3[%c0_5, %c0_6], %5 {strides = array<i32>} : memref<96x8xf32, #tpu.memory_space<vmem>>, vector<96x8xf32>,
    return
  }
}

module attributes {stable_mosaic.version = 11 : i64} {
  func.func @_deconv_bn_relu_kernel(%arg0: memref<96x24xbf16, #tpu.memory_space<vmem>>, %arg1: memref<24x96xbf16, #tpu.memory_space<vmem>>, %arg2: memref<1x24xf32, #tpu.memory_space<vmem>>, %arg3: memref<1x24xf32, #tpu.memory_space<vmem>>, %arg4: memref<96x24xf32, #tpu.memory_space<vmem>>, %arg5: memref<24x96xf32, #tpu.memory_space<vmem>>, %arg6: memref<96x96xf32, #tpu.memory_space<vmem>>) attributes {dimension_semantics = [], scalar_prefetch = 0 : i64, scratch_operands = 0 : i64, tpu.core_type = #tpu.core_type<tc>} {
    %c0 = arith.constant 0 : index
    %c0_0 = arith.constant 0 : index
    %0 = vector.load %arg0[%c0, %c0_0] : memref<96x24xbf16, #tpu.memory_space<vmem>>, vector<96x24xbf16>
    %c0_1 = arith.constant 0 : index
    %c0_2 = arith.constant 0 : index
    %1 = vector.load %arg1[%c0_1, %c0_2] : memref<24x96xbf16, #tpu.memory_space<vmem>>, vector<24x96xbf16>
    %cst = arith.constant dense<0.000000e+00> : vector<96x96xf32>
    %2 = tpu.matmul %0, %1, %cst {dimension_numbers = #tpu.dot_dimension_numbers<[1], [0], [0], [1], [0, 0, 1, 1], [], []>} : vector<96x24xbf16>, vector<24x96xbf16>, vector<96x96xf32> -> vector<96x96xf32>
    %cst_3 = arith.constant dense<0.000000e+00> : vector<96xf32>
    %3 = vector.multi_reduction <add>, %2, %cst_3 [0] : vector<96x96xf32> to vector<96xf32>
    %4 = vector.shape_cast %3 : vector<96xf32> to vector<1x96xf32>
    %c0_4 = arith.constant 0 : index
    %c0_5 = arith.constant 0 : index
    %5 = vector.load %arg4[%c0_4, %c0_5] : memref<96x24xf32, #tpu.memory_space<vmem>>, vector<96x24xf32>
    %cst_6 = arith.constant dense<0.000000e+00> : vector<1x24xf32>
    %6 = tpu.matmul %4, %5, %cst_6 {dimension_numbers = #tpu.dot_dimension_numbers<[1], [0], [0], [1], [0, 0, 1, 1], [], []>} : vector<1x96xf32>, vector<96x24xf32>, vector<1x24xf32> -> vector<1x24xf32>
    %cst_7 = arith.constant 0.00260416674 : f32
    %7 = vector.broadcast %cst_7 : f32 to vector<1x24xf32>
    %8 = arith.mulf %6, %7 : vector<1x24xf32>
    %c0_8 = arith.constant 0 : index
    %c0_9 = arith.constant 0 : index
    %9 = vector.load %arg5[%c0_8, %c0_9] : memref<24x96xf32, #tpu.memory_space<vmem>>, vector<24x96xf32>
    %cst_10 = arith.constant dense<0.000000e+00> : vector<1x96xf32>
    %10 = tpu.matmul %8, %9, %cst_10 {dimension_numbers = #tpu.dot_dimension_numbers<[1], [0], [0], [1], [0, 0, 1, 1], [], []>} : vector<1x24xf32>, vector<24x96xf32>, vector<1x96xf32> -> vector<1x96xf32>
    %11 = vector.broadcast %10 : vector<1x96xf32> to vector<96x96xf32>
    %12 = arith.subf %2, %11 : vector<96x96xf32>
    %13 = arith.mulf %12, %12 : vector<96x96xf32>
    %cst_11 = arith.constant dense<0.000000e+00> : vector<96xf32>
    %14 = vector.multi_reduction <add>, %13, %cst_11 [0] : vector<96x96xf32> to vector<96xf32>
    %15 = vector.shape_cast %14 : vector<96xf32> to vector<1x96xf32>
    %c0_12 = arith.constant 0 : index
    %c0_13 = arith.constant 0 : index
    %16 = vector.load %arg4[%c0_12, %c0_13] : memref<96x24xf32, #tpu.memory_space<vmem>>, vector<96x24xf32>
    %cst_14 = arith.constant dense<0.000000e+00> : vector<1x24xf32>
    %17 = tpu.matmul %15, %16, %cst_14 {dimension_numbers = #tpu.dot_dimension_numbers<[1], [0], [0], [1], [0, 0, 1, 1], [], []>} : vector<1x96xf32>, vector<96x24xf32>, vector<1x24xf32> -> vector<1x24xf32>
    %cst_15 = arith.constant 0.00260416674 : f32
    %18 = vector.broadcast %cst_15 : f32 to vector<1x24xf32>
    %19 = arith.mulf %17, %18 : vector<1x24xf32>
    %c0_16 = arith.constant 0 : index
    %c0_17 = arith.constant 0 : index
    %20 = vector.load %arg2[%c0_16, %c0_17] : memref<1x24xf32, #tpu.memory_space<vmem>>, vector<1x24xf32>
    %cst_18 = arith.constant 9.99999974E-6 : f32
    %21 = vector.broadcast %cst_18 : f32 to vector<1x24xf32>
    %22 = arith.addf %19, %21 : vector<1x24xf32>
    %23 = math.rsqrt %22 : vector<1x24xf32>
    %24 = arith.mulf %20, %23 : vector<1x24xf32>
    %c0_19 = arith.constant 0 : index
    %c0_20 = arith.constant 0 : index
    %25 = vector.load %arg3[%c0_19, %c0_20] : memref<1x24xf32, #tpu.memory_space<vmem>>, vector<1x24xf32>
    %26 = arith.mulf %8, %24 : vector<1x24xf32>
    %27 = arith.subf %25, %26 : vector<1x24xf32>
    %c0_21 = arith.constant 0 : index
    %c0_22 = arith.constant 0 : index
    %28 = vector.load %arg5[%c0_21, %c0_22] : memref<24x96xf32, #tpu.memory_space<vmem>>, vector<24x96xf32>
    %cst_23 = arith.constant dense<0.000000e+00> : vector<1x96xf32>
    %29 = tpu.matmul %24, %28, %cst_23 {dimension_numbers = #tpu.dot_dimension_numbers<[1], [0], [0], [1], [0, 0, 1, 1], [], []>} : vector<1x24xf32>, vector<24x96xf32>, vector<1x96xf32> -> vector<1x96xf32>
    %c0_24 = arith.constant 0 : index
    %c0_25 = arith.constant 0 : index
    %30 = vector.load %arg5[%c0_24, %c0_25] : memref<24x96xf32, #tpu.memory_space<vmem>>, vector<24x96xf32>
    %cst_26 = arith.constant dense<0.000000e+00> : vector<1x96xf32>
    %31 = tpu.matmul %27, %30, %cst_26 {dimension_numbers = #tpu.dot_dimension_numbers<[1], [0], [0], [1], [0, 0, 1, 1], [], []>} : vector<1x24xf32>, vector<24x96xf32>, vector<1x96xf32> -> vector<1x96xf32>
    %32 = vector.broadcast %29 : vector<1x96xf32> to vector<96x96xf32>
    %33 = arith.mulf %2, %32 : vector<96x96xf32>
    %34 = vector.broadcast %31 : vector<1x96xf32> to vector<96x96xf32>
    %35 = arith.addf %33, %34 : vector<96x96xf32>
    %cst_27 = arith.constant 0.000000e+00 : f32
    %36 = vector.broadcast %cst_27 : f32 to vector<96x96xf32>
    %37 = arith.maximumf %35, %36 : vector<96x96xf32>
    %c0_28 = arith.constant 0 : index
    %c0_29 = arith.constant 0 : index
    %38 = vector.load %arg6[%c0_28, %c0_29] : memref<96x96xf32, #tpu.memory_space<vmem>>, vector<96x96xf32>
    tpu.vector_store %arg6[%c0_28, %c0_29], %37 {strides = array<i32>} : memref<96x96xf32, #tpu.memory_space<vmem>>, vector<96x96xf32>,
    return
  }
}

</mosaic_0001>

<llo_original>
// kernel: tile.24
$region0: #{tile.24}
  #allocation0 [shape = 's32[1]{0}', space=sflag, size = 0x4, scoped, tag = 'scoped memory for tile.24']
  %s0 = inlined_call_operand.vmem [shape: f32[8], index: 0, kind: input, shape index: {}]
  %s1 = inlined_call_operand.vmem [shape: f32[16,8], index: 1, kind: output, shape index: {}]
  // Predicated region
  $region2: #{tile.24} parent=0 // pred_check
    _
  $region3: #{tile.24} parent=0 // pred_check_branch
    %3 = sbr.rel (0) target = $region5
  $region4: #{tile.24} parent=0 // pred_region
    _
  $region5: #{tile.24} parent=0 // pred_fallthru
    _
  %v4 = vld [vmem:[%s0] ss:$0 sm:$0xff]
  %5 = vst [vmem:[%s1] sm:$0xff] %v4
  %s6 = scalar_lea.vmem %s1, 8
  %7 = vst [vmem:[%s6] sm:$0xff] %v4

// kernel: tile.20
$region0: #{tile.20}
  #allocation0 [shape = 's32[1]{0}', space=sflag, size = 0x4, scoped, tag = 'scoped memory for tile.20']
  %s0 = inlined_call_operand.vmem [shape: f32[8], index: 0, kind: input, shape index: {}]
  %s1 = inlined_call_operand.vmem [shape: f32[4,8], index: 1, kind: output, shape index: {}]
  // Predicated region
  $region2: #{tile.20} parent=0 // pred_check
    _
  $region3: #{tile.20} parent=0 // pred_check_branch
    %3 = sbr.rel (0) target = $region5
  $region4: #{tile.20} parent=0 // pred_region
    _
  $region5: #{tile.20} parent=0 // pred_fallthru
    _
  %v4 = vld [vmem:[%s0] ss:$0 sm:$0xff]
  %5 = vst [vmem:[%s1] sm:$0xf] %v4

// kernel: tile.21
$region0: #{tile.21}
  %s0 = inlined_call_operand.vmem [shape: f32[4,8], index: 0, kind: input, shape index: {}]
  %s1 = inlined_call_operand.vmem [shape: f32[1,32], index: 1, kind: output, shape index: {}]
  $region1: #{tile.21} parent=0
    #allocation0 [shape = 'u8[4096]{0}', space=vmem, size = 0x1000, scoped, tag = 'scoped mem for output reshape']
    #allocation1 [shape = 'u8[4096]{0}', space=vmem, size = 0x1000, scoped, tag = 'scoped mem for input reshape']
    %s3 = sshllo.u32 0, 4
    %v4 = vld [vmem:[%s0] sm:%s3]
    %5 = vst [vmem:[#allocation1] sm:%s3] %v4
    %v6 = vld [vmem:[#allocation1] sm:$0x1]
    %vm7 = vcmask 64512
    %8 = vst.msk [vmem:[#allocation0] sm:$0x1] %vm7, %v6
    %s9 = scalar_lea.vmem [#allocation1], 3
    %v10 = vld [vmem:[%s9] sm:$0x1]
    %11 = vrot.lane.b32.xlu0 %v10, 24
    %v12 = vpop.permute.xlu0 %11
    %vm13 = vcmask 261312
    %14 = vst.msk [vmem:[#allocation0] sm:$0x1] %vm13, %v12
    %s15 = scalar_lea.vmem [#allocation1], 2
    %v16 = vld [vmem:[%s15] sm:$0x1]
    %17 = vrot.lane.b32.xlu0 %v16, 16
    %v18 = vpop.permute.xlu0 %17
    %vm19 = vcmask 195712
    %20 = vst.msk [vmem:[#allocation0] sm:$0x1] %vm19, %v18
    %s21 = scalar_lea.vmem [#allocation1], 1
    %v22 = vld [vmem:[%s21] sm:$0x1]
    %23 = vrot.lane.b32.xlu0 %v22, 8
    %v24 = vpop.permute.xlu0 %23
    %vm25 = vcmask 130112
    %26 = vst.msk [vmem:[#allocation0] sm:$0x1] %vm25, %v24
    %s28 = sshllo.u32 0, 1
    %v30 = vld [vmem:[#allocation0] sm:%s28]
    %s31 = sshllo.u32 0, 1
    %32 = vst [vmem:[%s1] sm:%s31] %v30

// kernel: tile.25
$region0: #{tile.25}
  %s0 = inlined_call_operand.vmem [shape: f32[16,8], index: 0, kind: input, shape index: {}]
  %s1 = inlined_call_operand.vmem [shape: f32[1,128], index: 1, kind: output, shape index: {}]
  $region1: #{tile.25} parent=0
    #allocation0 [shape = 'u8[4096]{0}', space=vmem, size = 0x1000, scoped, tag = 'scoped mem for output reshape']
    %v2 = vld [vmem:[%s0] sm:$0x1]
    %vm3 = vcmask 64512
    %4 = vst.msk [vmem:[#allocation0] sm:$0x1] %vm3, %v2
    %s5 = scalar_lea.vmem %s0, 15
    %v6 = vld [vmem:[%s5] sm:$0x1]
    %7 = vrot.lane.b32.xlu0 %v6, 120
    %v8 = vpop.permute.xlu0 %7
    %vm9 = vcmask 1048512
    %10 = vst.msk [vmem:[#allocation0] sm:$0x1] %vm9, %v8
    %s11 = scalar_lea.vmem %s0, 14
    %v12 = vld [vmem:[%s11] sm:$0x1]
    %13 = vrot.lane.b32.xlu0 %v12, 112
    %v14 = vpop.permute.xlu0 %13
    %vm15 = vcmask 982912
    %16 = vst.msk [vmem:[#allocation0] sm:$0x1] %vm15, %v14
    %s17 = scalar_lea.vmem %s0, 13
    %v18 = vld [vmem:[%s17] sm:$0x1]
    %19 = vrot.lane.b32.xlu0 %v18, 104
    %v20 = vpop.permute.xlu0 %19
    %vm21 = vcmask 917312
    %22 = vst.msk [vmem:[#allocation0] sm:$0x1] %vm21, %v20
    %s23 = scalar_lea.vmem %s0, 12
    %v24 = vld [vmem:[%s23] sm:$0x1]
    %25 = vrot.lane.b32.xlu0 %v24, 96
    %v26 = vpop.permute.xlu0 %25
    %vm27 = vcmask 851712
    %28 = vst.msk [vmem:[#allocation0] sm:$0x1] %vm27, %v26
    %s29 = scalar_lea.vmem %s0, 11
    %v30 = vld [vmem:[%s29] sm:$0x1]
    %31 = vrot.lane.b32.xlu0 %v30, 88
    %v32 = vpop.permute.xlu0 %31
    %vm33 = vcmask 786112
    %34 = vst.msk [vmem:[#allocation0] sm:$0x1] %vm33, %v32
    %s35 = scalar_lea.vmem %s0, 10
    %v36 = vld [vmem:[%s35] sm:$0x1]
    %37 = vrot.lane.b32.xlu0 %v36, 80
    %v38 = vpop.permute.xlu0 %37
    %vm39 = vcmask 720512
    %40 = vst.msk [vmem:[#allocation0] sm:$0x1] %vm39, %v38
    %s41 = scalar_lea.vmem %s0, 9
    %v42 = vld [vmem:[%s41] sm:$0x1]
    %43 = vrot.lane.b32.xlu0 %v42, 72
    %v44 = vpop.permute.xlu0 %43
    %vm45 = vcmask 654912
    %46 = vst.msk [vmem:[#allocation0] sm:$0x1] %vm45, %v44
    %s47 = scalar_lea.vmem %s0, 8
    %v48 = vld [vmem:[%s47] sm:$0x1]
    %49 = vrot.lane.b32.xlu0 %v48, 64
    %v50 = vpop.permute.xlu0 %49
    %vm51 = vcmask 589312
    %52 = vst.msk [vmem:[#allocation0] sm:$0x1] %vm51, %v50
    %s53 = scalar_lea.vmem %s0, 7
    %v54 = vld [vmem:[%s53] sm:$0x1]
    %55 = vrot.lane.b32.xlu0 %v54, 56
    %v56 = vpop.permute.xlu0 %55
    %vm57 = vcmask 523712
    %58 = vst.msk [vmem:[#allocation0] sm:$0x1] %vm57, %v56
    %s59 = scalar_lea.vmem %s0, 6
    %v60 = vld [vmem:[%s59] sm:$0x1]
    %61 = vrot.lane.b32.xlu0 %v60, 48
    %v62 = vpop.permute.xlu0 %61
    %vm63 = vcmask 458112
    %64 = vst.msk [vmem:[#allocation0] sm:$0x1] %vm63, %v62
    %s65 = scalar_lea.vmem %s0, 5
    %v66 = vld [vmem:[%s65] sm:$0x1]
    %67 = vrot.lane.b32.xlu0 %v66, 40
    %v68 = vpop.permute.xlu0 %67
    %vm69 = vcmask 392512
    %70 = vst.msk [vmem:[#allocation0] sm:$0x1] %vm69, %v68
    %s71 = scalar_lea.vmem %s0, 4
    %v72 = vld [vmem:[%s71] sm:$0x1]
    %73 = vrot.lane.b32.xlu0 %v72, 32
    %v74 = vpop.permute.xlu0 %73
    %vm75 = vcmask 326912
    %76 = vst.msk [vmem:[#allocation0] sm:$0x1] %vm75, %v74
    %s77 = scalar_lea.vmem %s0, 3
    %v78 = vld [vmem:[%s77] sm:$0x1]
    %79 = vrot.lane.b32.xlu0 %v78, 24
    %v80 = vpop.permute.xlu0 %79
    %vm81 = vcmask 261312
    %82 = vst.msk [vmem:[#allocation0] sm:$0x1] %vm81, %v80
    %s83 = scalar_lea.vmem %s0, 2
    %v84 = vld [vmem:[%s83] sm:$0x1]
    %85 = vrot.lane.b32.xlu0 %v84, 16
    %v86 = vpop.permute.xlu0 %85
    %vm87 = vcmask 195712
    %88 = vst.msk [vmem:[#allocation0] sm:$0x1] %vm87, %v86
    %s89 = scalar_lea.vmem %s0, 1
    %v90 = vld [vmem:[%s89] sm:$0x1]
    %91 = vrot.lane.b32.xlu0 %v90, 8
    %v92 = vpop.permute.xlu0 %91
    %vm93 = vcmask 130112
    %94 = vst.msk [vmem:[#allocation0] sm:$0x1] %vm93, %v92
    %s96 = sshllo.u32 0, 1
    %v98 = vld [vmem:[#allocation0] sm:%s96]
    %s99 = sshllo.u32 0, 1
    %100 = vst [vmem:[%s1] sm:%s99] %v98

// kernel: tile.35
$region0: #{tile.35}
  %s0 = inlined_call_operand.vmem [shape: f32[24,4,24], index: 0, kind: input, shape index: {}]
  %s1 = inlined_call_operand.vmem [shape: f32[24,96], index: 1, kind: output, shape index: {}]
  $region1: #{tile.35} parent=0
    #allocation0 [shape = 'u8[98304]{0}', space=vmem, size = 0x18000, scoped, tag = 'scoped mem for input reshape']
    %s3 = sshllo.u32 0, 4
    %s4 = smul.addr 4, 23
    %s5 = scalar_lea.vmem %s0, %s4
    %v6 = vld [vmem:[%s5] sm:%s3]
    %s7 = scalar_lea.vmem [#allocation0], 184
    %8 = vst [vmem:[%s7] sm:%s3] %v6
    %s9 = smul.addr 4, 22
    %s10 = scalar_lea.vmem %s0, %s9
    %v11 = vld [vmem:[%s10] sm:%s3]
    %s12 = scalar_lea.vmem [#allocation0], 176
    %13 = vst [vmem:[%s12] sm:%s3] %v11
    %s14 = smul.addr 4, 21
    %s15 = scalar_lea.vmem %s0, %s14
    %v16 = vld [vmem:[%s15] sm:%s3]
    %s17 = scalar_lea.vmem [#allocation0], 168
    %18 = vst [vmem:[%s17] sm:%s3] %v16
    %s19 = smul.addr 4, 20
    %s20 = scalar_lea.vmem %s0, %s19
    %v21 = vld [vmem:[%s20] sm:%s3]
    %s22 = scalar_lea.vmem [#allocation0], 160
    %23 = vst [vmem:[%s22] sm:%s3] %v21
    %s24 = smul.addr 4, 19
    %s25 = scalar_lea.vmem %s0, %s24
    %v26 = vld [vmem:[%s25] sm:%s3]
    %s27 = scalar_lea.vmem [#allocation0], 152
    %28 = vst [vmem:[%s27] sm:%s3] %v26
    %s29 = smul.addr 4, 18
    %s30 = scalar_lea.vmem %s0, %s29
    %v31 = vld [vmem:[%s30] sm:%s3]
    %s32 = scalar_lea.vmem [#allocation0], 144
    %33 = vst [vmem:[%s32] sm:%s3] %v31
    %s34 = smul.addr 4, 17
    %s35 = scalar_lea.vmem %s0, %s34
    %v36 = vld [vmem:[%s35] sm:%s3]
    %s37 = scalar_lea.vmem [#allocation0], 136
    %38 = vst [vmem:[%s37] sm:%s3] %v36
    %s39 = smul.addr 4, 16
    %s40 = scalar_lea.vmem %s0, %s39
    %v41 = vld [vmem:[%s40] sm:%s3]
    %s42 = scalar_lea.vmem [#allocation0], 128
    %43 = vst [vmem:[%s42] sm:%s3] %v41
    %s44 = smul.addr 4, 15
    %s45 = scalar_lea.vmem %s0, %s44
    %v46 = vld [vmem:[%s45] sm:%s3]
    %s47 = scalar_lea.vmem [#allocation0], 120
    %48 = vst [vmem:[%s47] sm:%s3] %v46
    %s49 = smul.addr 4, 14
    %s50 = scalar_lea.vmem %s0, %s49
    %v51 = vld [vmem:[%s50] sm:%s3]
    %s52 = scalar_lea.vmem [#allocation0], 112
    %53 = vst [vmem:[%s52] sm:%s3] %v51
    %s54 = smul.addr 4, 13
    %s55 = scalar_lea.vmem %s0, %s54
    %v56 = vld [vmem:[%s55] sm:%s3]
    %s57 = scalar_lea.vmem [#allocation0], 104
    %58 = vst [vmem:[%s57] sm:%s3] %v56
    %s59 = smul.addr 4, 12
    %s60 = scalar_lea.vmem %s0, %s59
    %v61 = vld [vmem:[%s60] sm:%s3]
    %s62 = scalar_lea.vmem [#allocation0], 96
    %63 = vst [vmem:[%s62] sm:%s3] %v61
    %s64 = smul.addr 4, 11
    %s65 = scalar_lea.vmem %s0, %s64
    %v66 = vld [vmem:[%s65] sm:%s3]
    %s67 = scalar_lea.vmem [#allocation0], 88
    %68 = vst [vmem:[%s67] sm:%s3] %v66
    %s69 = smul.addr 4, 10
    %s70 = scalar_lea.vmem %s0, %s69
    %v71 = vld [vmem:[%s70] sm:%s3]
    %s72 = scalar_lea.vmem [#allocation0], 80
    %73 = vst [vmem:[%s72] sm:%s3] %v71
    %s74 = smul.addr 4, 9
    %s75 = scalar_lea.vmem %s0, %s74
    %v76 = vld [vmem:[%s75] sm:%s3]
    %s77 = scalar_lea.vmem [#allocation0], 72
    %78 = vst [vmem:[%s77] sm:%s3] %v76
    %s79 = smul.addr 4, 8
    %s80 = scalar_lea.vmem %s0, %s79
    %v81 = vld [vmem:[%s80] sm:%s3]
    %s82 = scalar_lea.vmem [#allocation0], 64
    %83 = vst [vmem:[%s82] sm:%s3] %v81
    %s84 = smul.addr 4, 7
    %s85 = scalar_lea.vmem %s0, %s84
    %v86 = vld [vmem:[%s85] sm:%s3]
    %s87 = scalar_lea.vmem [#allocation0], 56
    %88 = vst [vmem:[%s87] sm:%s3] %v86
    %s89 = smul.addr 4, 6
    %s90 = scalar_lea.vmem %s0, %s89
    %v91 = vld [vmem:[%s90] sm:%s3]
    %s92 = scalar_lea.vmem [#allocation0], 48
    %93 = vst [vmem:[%s92] sm:%s3] %v91
    %s94 = smul.addr 4, 5
    %s95 = scalar_lea.vmem %s0, %s94
    %v96 = vld [vmem:[%s95] sm:%s3]
    %s97 = scalar_lea.vmem [#allocation0], 40
    %98 = vst [vmem:[%s97] sm:%s3] %v96
    %s99 = smul.addr 4, 4
    %s100 = scalar_lea.vmem %s0, %s99
    %v101 = vld [vmem:[%s100] sm:%s3]
    %s102 = scalar_lea.vmem [#allocation0], 32
    %103 = vst [vmem:[%s102] sm:%s3] %v101
    %s104 = smul.addr 4, 3
    %s105 = scalar_lea.vmem %s0, %s104
    %v106 = vld [vmem:[%s105] sm:%s3]
    %s107 = scalar_lea.vmem [#allocation0], 24
    %108 = vst [vmem:[%s107] sm:%s3] %v106
    %s109 = smul.addr 4, 2
    %s110 = scalar_lea.vmem %s0, %s109
    %v111 = vld [vmem:[%s110] sm:%s3]
    %s112 = scalar_lea.vmem [#allocation0], 16
    %113 = vst [vmem:[%s112] sm:%s3] %v111
    %s114 = scalar_lea.vmem %s0, 4
    %v115 = vld [vmem:[%s114] sm:%s3]
    %s116 = scalar_lea.vmem [#allocation0], 8
    %117 = vst [vmem:[%s116] sm:%s3] %v115
    %v118 = vld [vmem:[%s0] sm:%s3]
    %119 = vst [vmem:[#allocation0] sm:%s3] %v118
    %v120 = vld [vmem:[#allocation0] ss:$8 sm:$0xf]
    %v121 = vld [vmem:[#allocation0] ss:$8 sm:$0xf0]
    %vm122 = vcmask 1047556
    %v123 = vsel %vm122, %v121, %v120
    %vm124 = vcmask 195584
    %125 = vst.msk [vmem:[%s1] sm:$0xff] %vm124, %v123
    %s126 = scalar_lea.vmem [#allocation0], 64
    %v127 = vld [vmem:[%s126] ss:$8 sm:$0xf]
    %s128 = scalar_lea.vmem [#allocation0], 64
    %v129 = vld [vmem:[%s128] ss:$8 sm:$0xf0]
    %vm130 = vcmask 1047556
    %v131 = vsel %vm130, %v129, %v127
    %vm132 = vcmask 195584
    %s133 = scalar_lea.vmem %s1, 8
    %134 = vst.msk [vmem:[%s133] sm:$0xff] %vm132, %v131
    %s135 = scalar_lea.vmem [#allocation0], 128
    %v136 = vld [vmem:[%s135] ss:$8 sm:$0xf]
    %s137 = scalar_lea.vmem [#allocation0], 128
    %v138 = vld [vmem:[%s137] ss:$8 sm:$0xf0]
    %vm139 = vcmask 1047556
    %v140 = vsel %vm139, %v138, %v136
    %vm141 = vcmask 195584
    %s142 = scalar_lea.vmem %s1, 16
    %143 = vst.msk [vmem:[%s142] sm:$0xff] %vm141, %v140
    %s144 = scalar_lea.vmem [#allocation0], 3
    %v145 = vld [vmem:[%s144] ss:$8 sm:$0xf]
    %s146 = scalar_lea.vmem [#allocation0], 3
    %v147 = vld [vmem:[%s146] ss:$8 sm:$0xf0]
    %vm148 = vcmask 1047556
    %v149 = vsel %vm148, %v147, %v145
    %150 = vrot.lane.b32.xlu0 %v149, 72
    %v151 = vpop.permute.xlu0 %150
    %vm152 = vcmask 785984
    %153 = vst.msk [vmem:[%s1] sm:$0xff] %vm152, %v151
    %s154 = scalar_lea.vmem [#allocation0], 67
    %v155 = vld [vmem:[%s154] ss:$8 sm:$0xf]
    %s156 = scalar_lea.vmem [#allocation0], 67
    %v157 = vld [vmem:[%s156] ss:$8 sm:$0xf0]
    %vm158 = vcmask 1047556
    %v159 = vsel %vm158, %v157, %v155
    %160 = vrot.lane.b32.xlu0 %v159, 72
    %v161 = vpop.permute.xlu0 %160
    %vm162 = vcmask 785984
    %s163 = scalar_lea.vmem %s1, 8
    %164 = vst.msk [vmem:[%s163] sm:$0xff] %vm162, %v161
    %s165 = scalar_lea.vmem [#allocation0], 131
    %v166 = vld [vmem:[%s165] ss:$8 sm:$0xf]
    %s167 = scalar_lea.vmem [#allocation0], 131
    %v168 = vld [vmem:[%s167] ss:$8 sm:$0xf0]
    %vm169 = vcmask 1047556
    %v170 = vsel %vm169, %v168, %v166
    %171 = vrot.lane.b32.xlu0 %v170, 72
    %v172 = vpop.permute.xlu0 %171
    %vm173 = vcmask 785984
    %s174 = scalar_lea.vmem %s1, 16
    %175 = vst.msk [vmem:[%s174] sm:$0xff] %vm173, %v172
    %s176 = scalar_lea.vmem [#allocation0], 2
    %v177 = vld [vmem:[%s176] ss:$8 sm:$0xf]
    %s178 = scalar_lea.vmem [#allocation0], 2
    %v179 = vld [vmem:[%s178] ss:$8 sm:$0xf0]
    %vm180 = vcmask 1047556
    %v181 = vsel %vm180, %v179, %v177
    %182 = vrot.lane.b32.xlu0 %v181, 48
    %v183 = vpop.permute.xlu0 %182
    %vm184 = vcmask 589184
    %185 = vst.msk [vmem:[%s1] sm:$0xff] %vm184, %v183
    %s186 = scalar_lea.vmem [#allocation0], 66
    %v187 = vld [vmem:[%s186] ss:$8 sm:$0xf]
    %s188 = scalar_lea.vmem [#allocation0], 66
    %v189 = vld [vmem:[%s188] ss:$8 sm:$0xf0]
    %vm190 = vcmask 1047556
    %v191 = vsel %vm190, %v189, %v187
    %192 = vrot.lane.b32.xlu0 %v191, 48
    %v193 = vpop.permute.xlu0 %192
    %vm194 = vcmask 589184
    %s195 = scalar_lea.vmem %s1, 8
    %196 = vst.msk [vmem:[%s195] sm:$0xff] %vm194, %v193
    %s197 = scalar_lea.vmem [#allocation0], 130
    %v198 = vld [vmem:[%s197] ss:$8 sm:$0xf]
    %s199 = scalar_lea.vmem [#allocation0], 130
    %v200 = vld [vmem:[%s199] ss:$8 sm:$0xf0]
    %vm201 = vcmask 1047556
    %v202 = vsel %vm201, %v200, %v198
    %203 = vrot.lane.b32.xlu0 %v202, 48
    %v204 = vpop.permute.xlu0 %203
    %vm205 = vcmask 589184
    %s206 = scalar_lea.vmem %s1, 16
    %207 = vst.msk [vmem:[%s206] sm:$0xff] %vm205, %v204
    %s208 = scalar_lea.vmem [#allocation0], 1
    %v209 = vld [vmem:[%s208] ss:$8 sm:$0xf]
    %s210 = scalar_lea.vmem [#allocation0], 1
    %v211 = vld [vmem:[%s210] ss:$8 sm:$0xf0]
    %vm212 = vcmask 1047556
    %v213 = vsel %vm212, %v211, %v209
    %214 = vrot.lane.b32.xlu0 %v213, 24
    %v215 = vpop.permute.xlu0 %214
    %vm216 = vcmask 392384
    %217 = vst.msk [vmem:[%s1] sm:$0xff] %vm216, %v215
    %s218 = scalar_lea.vmem [#allocation0], 65
    %v219 = vld [vmem:[%s218] ss:$8 sm:$0xf]
    %s220 = scalar_lea.vmem [#allocation0], 65
    %v221 = vld [vmem:[%s220] ss:$8 sm:$0xf0]
    %vm222 = vcmask 1047556
    %v223 = vsel %vm222, %v221, %v219
    %224 = vrot.lane.b32.xlu0 %v223, 24
    %v225 = vpop.permute.xlu0 %224
    %vm226 = vcmask 392384
    %s227 = scalar_lea.vmem %s1, 8
    %228 = vst.msk [vmem:[%s227] sm:$0xff] %vm226, %v225
    %s229 = scalar_lea.vmem [#allocation0], 129
    %v230 = vld [vmem:[%s229] ss:$8 sm:$0xf]
    %s231 = scalar_lea.vmem [#allocation0], 129
    %v232 = vld [vmem:[%s231] ss:$8 sm:$0xf0]
    %vm233 = vcmask 1047556
    %v234 = vsel %vm233, %v232, %v230
    %235 = vrot.lane.b32.xlu0 %v234, 24
    %v236 = vpop.permute.xlu0 %235
    %vm237 = vcmask 392384
    %s238 = scalar_lea.vmem %s1, 16
    %239 = vst.msk [vmem:[%s238] sm:$0xff] %vm237, %v236

// kernel: radar_block_forward.8
$region0: #{radar_block_forward.8}
  #allocation0 [shape = 'u32[]', space=smem, size = 0x4, offset = 0x4, fixed_abs, tag = 'smem constant byte address 0x4 - core index']
  #allocation1 [shape = 'u32[144,128]{1,0:T(1,128)}', space=vmem, size = 0x12000, scoped, tag = 'internal scratch']
  %s0 = inlined_call_operand.vmem [shape: bf16[24,36], index: 0, kind: input, shape index: {}]
  %s1 = inlined_call_operand.vmem [shape: bf16[36,8], index: 1, kind: input, shape index: {}]
  %s2 = inlined_call_operand.vmem [shape: f32[1,8], index: 2, kind: input, shape index: {}]
  %s3 = inlined_call_operand.vmem [shape: f32[1,8], index: 3, kind: input, shape index: {}]
  %s4 = inlined_call_operand.vmem [shape: f32[24,8], index: 4, kind: output, shape index: {}]
  %s5 = sld [smem:[#allocation0]]
  $region26: #{radar_block_forward.8} parent=0
    _
  %s7 = ssub.s32 1, %s5
  %s8 = scalar_select 0, %s7, %s5
  // Predicated region
  $region2: #{radar_block_forward.8} parent=0 // pred_check
    _
  $region3: #{radar_block_forward.8} parent=0 // pred_check_branch
    %10 = sbr.rel (0) target = $region5
  $region4: #{radar_block_forward.8} parent=0 // pred_region
    _
  $region5: #{radar_block_forward.8} parent=0 // pred_fallthru
    _
  // Predicated region
  $region6: #{radar_block_forward.8} parent=0 // pred_check
    _
  $region7: #{radar_block_forward.8} parent=0 // pred_check_branch
    %12 = sbr.rel (0) target = $region9
  $region8: #{radar_block_forward.8} parent=0 // pred_region
    _
  $region9: #{radar_block_forward.8} parent=0 // pred_fallthru
    _
  // Predicated region
  $region10: #{radar_block_forward.8} parent=0 // pred_check
    _
  $region11: #{radar_block_forward.8} parent=0 // pred_check_branch
    %14 = sbr.rel (0) target = $region13
  $region12: #{radar_block_forward.8} parent=0 // pred_region
    _
  $region13: #{radar_block_forward.8} parent=0 // pred_fallthru
    _
  // Predicated region
  $region14: #{radar_block_forward.8} parent=0 // pred_check
    _
  $region15: #{radar_block_forward.8} parent=0 // pred_check_branch
    %16 = sbr.rel (0) target = $region17
  $region16: #{radar_block_forward.8} parent=0 // pred_region
    _
  $region17: #{radar_block_forward.8} parent=0 // pred_fallthru
    _
  %v18 = vld [vmem:[%s0] sm:$0xf]
  %v19 = vld [vmem:[%s0 + $0x4] sm:$0xf]
  %v20 = vld [vmem:[%s0 + $0x8] sm:$0xf]
  %v21 = vld [vmem:[%s1] sm:$0xf]
  %v22 = vld [vmem:[%s1 + $0x4] sm:$0xf]
  %v23 = vld [vmem:[%s1 + $0x8] sm:$0xf]
  %v24 = vld [vmem:[%s1 + $0xc] sm:$0xf]
  %v25 = vld [vmem:[%s1 + $0x10] sm:$0x3]
  %v29 = vunpack.c.l.b16 %v18
  %v30 = vunpack.c.l.b16 %v19
  %v31 = vunpack.c.l.b16 %v20
  %v32 = vpack.c.b16 %v30, %v29
  %v33 = vpack.c.b16 %v31, %v31
  %v39 = vunpack.c.l.b16 %v21
  %v40 = vunpack.c.l.b16 %v22
  %v41 = vunpack.c.l.b16 %v23
  %v42 = vunpack.c.l.b16 %v24
  %v43 = vunpack.c.l.b16 %v25
  %v44 = vpack.c.b16 %v40, %v39
  %v45 = vpack.c.b16 %v42, %v41
  %v46 = vpack.c.b16 %v43, %v43
  %vm49 = vcmask 293888
  %v51 = vsel %vm49, %v32, 0
  %v54 = vsel %vm49, %v33, 0
  %vm56 = vcmask 1041408
  %v58 = vsel %vm56, %v46, 0
  %60 = vmatprep.subr.bf16.mxu0 0
  %61 = vmatpush1.bf16.msra.mxu0 %v44
  %62 = vmatprep.subr.bf16.mxu0 0
  %63 = vmatpush1.bf16.msra.mxu0 %v45
  %64 = vmatprep.subr.bf16.mxu0 0
  %65 = vmatpush1.bf16.msra.mxu0 %v58
  %66 = vmatprep.subr.bf16.mxu0 0
  %67 = vmatpush1.bf16.msra.mxu0 0
  %68 = vmatprep.subr.bf16.mxu0 0
  %69 = vmatpush1.bf16.msra.mxu0 0
  %70 = vmatprep.subr.bf16.mxu0 0
  %71 = vmatpush1.bf16.msra.mxu0 0
  %72 = vmatprep.subr.bf16.mxu0 0
  %73 = vmatpush1.bf16.msra.mxu0 0
  %74 = vmatprep.subr.bf16.mxu0 0
  %75 = vmatpush1.bf16.msra.mxu0 0
  %76 = vmatprep.subr.bf16.mxu0 0
  %77 = vmatpush1.bf16.msra.mxu0 0
  %78 = vmatprep.subr.bf16.mxu0 0
  %79 = vmatpush1.bf16.msra.mxu0 0
  %80 = vmatprep.subr.bf16.mxu0 0
  %81 = vmatpush1.bf16.msra.mxu0 0
  %82 = vmatprep.subr.bf16.mxu0 0
  %83 = vmatpush1.bf16.msra.mxu0 0
  %84 = vmatprep.subr.bf16.mxu0 0
  %85 = vmatpush1.bf16.msra.mxu0 0
  %86 = vmatprep.subr.bf16.mxu0 0
  %87 = vmatpush1.bf16.msra.mxu0 0
  %88 = vmatprep.subr.bf16.mxu0 0
  %89 = vmatpush1.bf16.msra.mxu0 0
  %90 = vmatprep.subr.bf16.mxu0 0
  %91 = vmatpush1.bf16.msra.mxu0 0
  %92 = vmatprep.mubr.bf16.mxu0 0
  %93 = vmatmul.mubr.bf16.gmra.mrb[0].mxu0 %v51
  %v94 = vpop.f32.mrb[0].mxu0
  %v95 = vadd.f32 0.0, %v94
  %v96 = vpop.f32.mrb[0].mxu0
  %v97 = vpop.f32.mrb[0].mxu0
  %v98 = vadd.f32 0.0, %v97
  %v99 = vpop.f32.mrb[0].mxu0
  %100 = vmatprep.mubr.bf16.mxu0 0
  %101 = vmatmul.mubr.bf16.gmra.mrb[0].mxu0 %v54
  %v102 = vpop.f32.mrb[0].mxu0
  %v103 = vadd.f32 0.0, %v102
  %v104 = vpop.f32.mrb[0].mxu0
  %v105 = vpop.f32.mrb[0].mxu0
  %v106 = vpop.f32.mrb[0].mxu0
  %107 = vdwg.mxu0
  %vm108 = vcmask 64512
  %v109 = vsel %vm108, %v95, 0.0
  %v110 = vsel %vm108, %v98, 0.0
  %v111 = vadd.f32 %v109, %v110
  %v112 = vsel %vm108, %v103, 0.0
  %v113 = vadd.f32 %v111, %v112
  %v114 = vrot.slane %v113, 4
  %v115 = vadd.f32 %v113, %v114
  %v116 = vrot.slane %v115, 2
  %v117 = vadd.f32 %v115, %v116
  %v118 = vrot.slane %v117, 1
  %v119 = vadd.f32 %v117, %v118
  %v120 = vmul.f32 %v119, 0.041666668
  %v121 = vsub.f32 %v95, %v120
  %v122 = vsub.f32 %v98, %v120
  %v123 = vsub.f32 %v103, %v120
  %v124 = vmul.f32 %v121, %v121
  %v125 = vmul.f32 %v122, %v122
  %v126 = vmul.f32 %v123, %v123
  %v127 = vsel %vm108, %v124, 0.0
  %v128 = vsel %vm108, %v125, 0.0
  %v129 = vadd.f32 %v127, %v128
  %v130 = vsel %vm108, %v126, 0.0
  %v131 = vadd.f32 %v129, %v130
  %v132 = vrot.slane %v131, 4
  %v133 = vadd.f32 %v131, %v132
  %v134 = vrot.slane %v133, 2
  %v135 = vadd.f32 %v133, %v134
  %v136 = vrot.slane %v135, 1
  %v137 = vadd.f32 %v135, %v136
  %v138 = vmul.f32 %v137, 0.041666668
  %v139 = vld [vmem:[%s2] sm:$0x1]
  %v140 = vadd.f32 %v138, 1e-05
  %v141 = vrsqrt.pop %v140
  %v142 = vmul.f32 %v139, %v141
  %v143 = vld [vmem:[%s3] sm:$0x1]
  %v144 = vmul.f32 %v120, %v142
  %v145 = vsub.f32 %v143, %v144
  %v147 = vlaneseq
  %v148 = vshrl.u32 %v147, 7
  %v149 = vsub.s32 0, %v148
  %v150 = vrot.slane %v142, %v149
  %v152 = vmul.f32 %v95, %v150
  %v153 = vmul.f32 %v98, %v150
  %v154 = vmul.f32 %v103, %v150
  %v156 = vlaneseq
  %v157 = vshrl.u32 %v156, 7
  %v158 = vsub.s32 0, %v157
  %v159 = vrot.slane %v145, %v158
  %v161 = vadd.f32 %v152, %v159
  %v162 = vadd.f32 %v153, %v159
  %v163 = vadd.f32 %v154, %v159
  %v164 = vmax.f32 %v161, 0.0
  %v165 = vmax.f32 %v162, 0.0
  %v166 = vmax.f32 %v163, 0.0
  %167 = vst.msk [vmem:[%s4] sm:$0xff] %vm108, %v164
  %168 = vst.msk [vmem:[%s4 + $0x8] sm:$0xff] %vm108, %v165
  %169 = vst.msk [vmem:[%s4 + $0x10] sm:$0xff] %vm108, %v166
  // Predicated region
  $region18: #{radar_block_forward.8} parent=0 // pred_check
    _
  $region19: #{radar_block_forward.8} parent=0 // pred_check_branch
    %171 = sbr.rel (0) target = $region21
  $region20: #{radar_block_forward.8} parent=0 // pred_region
    _
  $region21: #{radar_block_forward.8} parent=0 // pred_fallthru
    _
  // Predicated region
  $region22: #{radar_block_forward.8} parent=0 // pred_check
    _
  $region23: #{radar_block_forward.8} parent=0 // pred_check_branch
    %173 = sbr.rel (0) target = $region25
  $region24: #{radar_block_forward.8} parent=0 // pred_region
    _
  $region25: #{radar_block_forward.8} parent=0 // pred_fallthru
    _

// kernel: radar_block_forward.7
$region0: #{radar_block_forward.7}
  #allocation0 [shape = 'u32[]', space=smem, size = 0x4, offset = 0x4, fixed_abs, tag = 'smem constant byte address 0x4 - core index']
  #allocation1 [shape = 'u32[144,128]{1,0:T(1,128)}', space=vmem, size = 0x12000, scoped, tag = 'internal scratch']
  %s0 = inlined_call_operand.vmem [shape: bf16[96,36], index: 0, kind: input, shape index: {}]
  %s1 = inlined_call_operand.vmem [shape: bf16[36,4], index: 1, kind: input, shape index: {}]
  %s2 = inlined_call_operand.vmem [shape: f32[1,4], index: 2, kind: input, shape index: {}]
  %s3 = inlined_call_operand.vmem [shape: f32[1,4], index: 3, kind: input, shape index: {}]
  %s4 = inlined_call_operand.vmem [shape: f32[96,4], index: 4, kind: output, shape index: {}]
  %s5 = sld [smem:[#allocation0]]
  $region26: #{radar_block_forward.7} parent=0
    _
  %s7 = ssub.s32 1, %s5
  %s8 = scalar_select 0, %s7, %s5
  // Predicated region
  $region2: #{radar_block_forward.7} parent=0 // pred_check
    _
  $region3: #{radar_block_forward.7} parent=0 // pred_check_branch
    %10 = sbr.rel (0) target = $region5
  $region4: #{radar_block_forward.7} parent=0 // pred_region
    _
  $region5: #{radar_block_forward.7} parent=0 // pred_fallthru
    _
  // Predicated region
  $region6: #{radar_block_forward.7} parent=0 // pred_check
    _
  $region7: #{radar_block_forward.7} parent=0 // pred_check_branch
    %12 = sbr.rel (0) target = $region9
  $region8: #{radar_block_forward.7} parent=0 // pred_region
    _
  $region9: #{radar_block_forward.7} parent=0 // pred_fallthru
    _
  // Predicated region
  $region10: #{radar_block_forward.7} parent=0 // pred_check
    _
  $region11: #{radar_block_forward.7} parent=0 // pred_check_branch
    %14 = sbr.rel (0) target = $region13
  $region12: #{radar_block_forward.7} parent=0 // pred_region
    _
  $region13: #{radar_block_forward.7} parent=0 // pred_fallthru
    _
  // Predicated region
  $region14: #{radar_block_forward.7} parent=0 // pred_check
    _
  $region15: #{radar_block_forward.7} parent=0 // pred_check_branch
    %16 = sbr.rel (0) target = $region17
  $region16: #{radar_block_forward.7} parent=0 // pred_region
    _
  $region17: #{radar_block_forward.7} parent=0 // pred_fallthru
    _
  %v18 = vld [vmem:[%s0] sm:$0xf]
  %v19 = vld [vmem:[%s0 + $0x4] sm:$0xf]
  %v20 = vld [vmem:[%s0 + $0x8] sm:$0xf]
  %v21 = vld [vmem:[%s0 + $0xc] sm:$0xf]
  %v22 = vld [vmem:[%s0 + $0x10] sm:$0xf]
  %v23 = vld [vmem:[%s0 + $0x14] sm:$0xf]
  %v24 = vld [vmem:[%s0 + $0x18] sm:$0xf]
  %v25 = vld [vmem:[%s0 + $0x1c] sm:$0xf]
  %v26 = vld [vmem:[%s0 + $0x20] sm:$0xf]
  %v27 = vld [vmem:[%s0 + $0x24] sm:$0xf]
  %v28 = vld [vmem:[%s0 + $0x28] sm:$0xf]
  %v29 = vld [vmem:[%s0 + $0x2c] sm:$0xf]
  %v30 = vld [vmem:[%s1] sm:$0xf]
  %v31 = vld [vmem:[%s1 + $0x4] sm:$0xf]
  %v32 = vld [vmem:[%s1 + $0x8] sm:$0xf]
  %v33 = vld [vmem:[%s1 + $0xc] sm:$0xf]
  %v34 = vld [vmem:[%s1 + $0x10] sm:$0x3]
  %v47 = vunpack.c.l.b16 %v18
  %v48 = vunpack.c.l.b16 %v19
  %v49 = vunpack.c.l.b16 %v20
  %v50 = vunpack.c.l.b16 %v21
  %v51 = vunpack.c.l.b16 %v22
  %v52 = vunpack.c.l.b16 %v23
  %v53 = vunpack.c.l.b16 %v24
  %v54 = vunpack.c.l.b16 %v25
  %v55 = vunpack.c.l.b16 %v26
  %v56 = vunpack.c.l.b16 %v27
  %v57 = vunpack.c.l.b16 %v28
  %v58 = vunpack.c.l.b16 %v29
  %v59 = vpack.c.b16 %v48, %v47
  %v60 = vpack.c.b16 %v50, %v49
  %v61 = vpack.c.b16 %v52, %v51
  %v62 = vpack.c.b16 %v54, %v53
  %v63 = vpack.c.b16 %v56, %v55
  %v64 = vpack.c.b16 %v58, %v57
  %v70 = vunpack.c.l.b16 %v30
  %v71 = vunpack.c.l.b16 %v31
  %v72 = vunpack.c.l.b16 %v32
  %v73 = vunpack.c.l.b16 %v33
  %v74 = vunpack.c.l.b16 %v34
  %v75 = vpack.c.b16 %v71, %v70
  %v76 = vpack.c.b16 %v73, %v72
  %v77 = vpack.c.b16 %v74, %v74
  %vm80 = vcmask 293888
  %v82 = vsel %vm80, %v59, 0
  %v85 = vsel %vm80, %v60, 0
  %v88 = vsel %vm80, %v61, 0
  %v91 = vsel %vm80, %v62, 0
  %v94 = vsel %vm80, %v63, 0
  %v97 = vsel %vm80, %v64, 0
  %vm99 = vcmask 1041408
  %v101 = vsel %vm99, %v77, 0
  %103 = vmatprep.subr.bf16.mxu0 0
  %104 = vmatpush1.bf16.msra.mxu0 %v75
  %105 = vmatprep.subr.bf16.mxu0 0
  %106 = vmatpush1.bf16.msra.mxu0 %v76
  %107 = vmatprep.subr.bf16.mxu0 0
  %108 = vmatpush1.bf16.msra.mxu0 %v101
  %109 = vmatprep.subr.bf16.mxu0 0
  %110 = vmatpush1.bf16.msra.mxu0 0
  %111 = vmatprep.subr.bf16.mxu0 0
  %112 = vmatpush1.bf16.msra.mxu0 0
  %113 = vmatprep.subr.bf16.mxu0 0
  %114 = vmatpush1.bf16.msra.mxu0 0
  %115 = vmatprep.subr.bf16.mxu0 0
  %116 = vmatpush1.bf16.msra.mxu0 0
  %117 = vmatprep.subr.bf16.mxu0 0
  %118 = vmatpush1.bf16.msra.mxu0 0
  %119 = vmatprep.subr.bf16.mxu0 0
  %120 = vmatpush1.bf16.msra.mxu0 0
  %121 = vmatprep.subr.bf16.mxu0 0
  %122 = vmatpush1.bf16.msra.mxu0 0
  %123 = vmatprep.subr.bf16.mxu0 0
  %124 = vmatpush1.bf16.msra.mxu0 0
  %125 = vmatprep.subr.bf16.mxu0 0
  %126 = vmatpush1.bf16.msra.mxu0 0
  %127 = vmatprep.subr.bf16.mxu0 0
  %128 = vmatpush1.bf16.msra.mxu0 0
  %129 = vmatprep.subr.bf16.mxu0 0
  %130 = vmatpush1.bf16.msra.mxu0 0
  %131 = vmatprep.subr.bf16.mxu0 0
  %132 = vmatpush1.bf16.msra.mxu0 0
  %133 = vmatprep.subr.bf16.mxu0 0
  %134 = vmatpush1.bf16.msra.mxu0 0
  %135 = vmatprep.mubr.bf16.mxu0 0
  %136 = vmatmul.mubr.bf16.gmra.mrb[0].mxu0 %v82
  %v137 = vpop.f32.mrb[0].mxu0
  %v138 = vadd.f32 0.0, %v137
  %v139 = vpop.f32.mrb[0].mxu0
  %v140 = vpop.f32.mrb[0].mxu0
  %v141 = vadd.f32 0.0, %v140
  %v142 = vpop.f32.mrb[0].mxu0
  %143 = vmatprep.mubr.bf16.mxu0 0
  %144 = vmatmul.mubr.bf16.gmra.mrb[0].mxu0 %v85
  %v145 = vpop.f32.mrb[0].mxu0
  %v146 = vadd.f32 0.0, %v145
  %v147 = vpop.f32.mrb[0].mxu0
  %v148 = vpop.f32.mrb[0].mxu0
  %v149 = vadd.f32 0.0, %v148
  %v150 = vpop.f32.mrb[0].mxu0
  %151 = vmatprep.mubr.bf16.mxu0 0
  %152 = vmatmul.mubr.bf16.gmra.mrb[0].mxu0 %v88
  %v153 = vpop.f32.mrb[0].mxu0
  %v154 = vadd.f32 0.0, %v153
  %v155 = vpop.f32.mrb[0].mxu0
  %v156 = vpop.f32.mrb[0].mxu0
  %v157 = vadd.f32 0.0, %v156
  %v158 = vpop.f32.mrb[0].mxu0
  %159 = vmatprep.mubr.bf16.mxu0 0
  %160 = vmatmul.mubr.bf16.gmra.mrb[0].mxu0 %v91
  %v161 = vpop.f32.mrb[0].mxu0
  %v162 = vadd.f32 0.0, %v161
  %v163 = vpop.f32.mrb[0].mxu0
  %v164 = vpop.f32.mrb[0].mxu0
  %v165 = vadd.f32 0.0, %v164
  %v166 = vpop.f32.mrb[0].mxu0
  %167 = vmatprep.mubr.bf16.mxu0 0
  %168 = vmatmul.mubr.bf16.gmra.mrb[0].mxu0 %v94
  %v169 = vpop.f32.mrb[0].mxu0
  %v170 = vadd.f32 0.0, %v169
  %v171 = vpop.f32.mrb[0].mxu0
  %v172 = vpop.f32.mrb[0].mxu0
  %v173 = vadd.f32 0.0, %v172
  %v174 = vpop.f32.mrb[0].mxu0
  %175 = vmatprep.mubr.bf16.mxu0 0
  %176 = vmatmul.mubr.bf16.gmra.mrb[0].mxu0 %v97
  %v177 = vpop.f32.mrb[0].mxu0
  %v178 = vadd.f32 0.0, %v177
  %v179 = vpop.f32.mrb[0].mxu0
  %v180 = vpop.f32.mrb[0].mxu0
  %v181 = vadd.f32 0.0, %v180
  %v182 = vpop.f32.mrb[0].mxu0
  %183 = vdwg.mxu0
  %vm184 = vcmask 31744
  %v185 = vsel %vm184, %v138, 0.0
  %v186 = vsel %vm184, %v141, 0.0
  %v187 = vadd.f32 %v185, %v186
  %v188 = vsel %vm184, %v146, 0.0
  %v189 = vadd.f32 %v187, %v188
  %v190 = vsel %vm184, %v149, 0.0
  %v191 = vadd.f32 %v189, %v190
  %v192 = vsel %vm184, %v154, 0.0
  %v193 = vadd.f32 %v191, %v192
  %v194 = vsel %vm184, %v157, 0.0
  %v195 = vadd.f32 %v193, %v194
  %v196 = vsel %vm184, %v162, 0.0
  %v197 = vadd.f32 %v195, %v196
  %v198 = vsel %vm184, %v165, 0.0
  %v199 = vadd.f32 %v197, %v198
  %v200 = vsel %vm184, %v170, 0.0
  %v201 = vadd.f32 %v199, %v200
  %v202 = vsel %vm184, %v173, 0.0
  %v203 = vadd.f32 %v201, %v202
  %v204 = vsel %vm184, %v178, 0.0
  %v205 = vadd.f32 %v203, %v204
  %v206 = vsel %vm184, %v181, 0.0
  %v207 = vadd.f32 %v205, %v206
  %v208 = vrot.slane %v207, 4
  %v209 = vadd.f32 %v207, %v208
  %v210 = vrot.slane %v209, 2
  %v211 = vadd.f32 %v209, %v210
  %v212 = vrot.slane %v211, 1
  %v213 = vadd.f32 %v211, %v212
  %v214 = vmul.f32 %v213, 0.010416667
  %v215 = vsub.f32 %v138, %v214
  %v216 = vsub.f32 %v141, %v214
  %v217 = vsub.f32 %v146, %v214
  %v218 = vsub.f32 %v149, %v214
  %v219 = vsub.f32 %v154, %v214
  %v220 = vsub.f32 %v157, %v214
  %v221 = vsub.f32 %v162, %v214
  %v222 = vsub.f32 %v165, %v214
  %v223 = vsub.f32 %v170, %v214
  %v224 = vsub.f32 %v173, %v214
  %v225 = vsub.f32 %v178, %v214
  %v226 = vsub.f32 %v181, %v214
  %v227 = vmul.f32 %v215, %v215
  %v228 = vmul.f32 %v216, %v216
  %v229 = vmul.f32 %v217, %v217
  %v230 = vmul.f32 %v218, %v218
  %v231 = vmul.f32 %v219, %v219
  %v232 = vmul.f32 %v220, %v220
  %v233 = vmul.f32 %v221, %v221
  %v234 = vmul.f32 %v222, %v222
  %v235 = vmul.f32 %v223, %v223
  %v236 = vmul.f32 %v224, %v224
  %v237 = vmul.f32 %v225, %v225
  %v238 = vmul.f32 %v226, %v226
  %v239 = vsel %vm184, %v227, 0.0
  %v240 = vsel %vm184, %v228, 0.0
  %v241 = vadd.f32 %v239, %v240
  %v242 = vsel %vm184, %v229, 0.0
  %v243 = vadd.f32 %v241, %v242
  %v244 = vsel %vm184, %v230, 0.0
  %v245 = vadd.f32 %v243, %v244
  %v246 = vsel %vm184, %v231, 0.0
  %v247 = vadd.f32 %v245, %v246
  %v248 = vsel %vm184, %v232, 0.0
  %v249 = vadd.f32 %v247, %v248
  %v250 = vsel %vm184, %v233, 0.0
  %v251 = vadd.f32 %v249, %v250
  %v252 = vsel %vm184, %v234, 0.0
  %v253 = vadd.f32 %v251, %v252
  %v254 = vsel %vm184, %v235, 0.0
  %v255 = vadd.f32 %v253, %v254
  %v256 = vsel %vm184, %v236, 0.0
  %v257 = vadd.f32 %v255, %v256
  %v258 = vsel %vm184, %v237, 0.0
  %v259 = vadd.f32 %v257, %v258
  %v260 = vsel %vm184, %v238, 0.0
  %v261 = vadd.f32 %v259, %v260
  %v262 = vrot.slane %v261, 4
  %v263 = vadd.f32 %v261, %v262
  %v264 = vrot.slane %v263, 2
  %v265 = vadd.f32 %v263, %v264
  %v266 = vrot.slane %v265, 1
  %v267 = vadd.f32 %v265, %v266
  %v268 = vmul.f32 %v267, 0.010416667
  %v269 = vld [vmem:[%s2] sm:$0x1]
  %v270 = vadd.f32 %v268, 1e-05
  %v271 = vrsqrt.pop %v270
  %v272 = vmul.f32 %v269, %v271
  %v273 = vld [vmem:[%s3] sm:$0x1]
  %v274 = vmul.f32 %v214, %v272
  %v275 = vsub.f32 %v273, %v274
  %v277 = vlaneseq
  %v278 = vshrl.u32 %v277, 7
  %v279 = vsub.s32 0, %v278
  %v280 = vrot.slane %v272, %v279
  %v282 = vmul.f32 %v138, %v280
  %v283 = vmul.f32 %v141, %v280
  %v284 = vmul.f32 %v146, %v280
  %v285 = vmul.f32 %v149, %v280
  %v286 = vmul.f32 %v154, %v280
  %v287 = vmul.f32 %v157, %v280
  %v288 = vmul.f32 %v162, %v280
  %v289 = vmul.f32 %v165, %v280
  %v290 = vmul.f32 %v170, %v280
  %v291 = vmul.f32 %v173, %v280
  %v292 = vmul.f32 %v178, %v280
  %v293 = vmul.f32 %v181, %v280
  %v295 = vlaneseq
  %v296 = vshrl.u32 %v295, 7
  %v297 = vsub.s32 0, %v296
  %v298 = vrot.slane %v275, %v297
  %v300 = vadd.f32 %v282, %v298
  %v301 = vadd.f32 %v283, %v298
  %v302 = vadd.f32 %v284, %v298
  %v303 = vadd.f32 %v285, %v298
  %v304 = vadd.f32 %v286, %v298
  %v305 = vadd.f32 %v287, %v298
  %v306 = vadd.f32 %v288, %v298
  %v307 = vadd.f32 %v289, %v298
  %v308 = vadd.f32 %v290, %v298
  %v309 = vadd.f32 %v291, %v298
  %v310 = vadd.f32 %v292, %v298
  %v311 = vadd.f32 %v293, %v298
  %v312 = vmax.f32 %v300, 0.0
  %v313 = vmax.f32 %v301, 0.0
  %v314 = vmax.f32 %v302, 0.0
  %v315 = vmax.f32 %v303, 0.0
  %v316 = vmax.f32 %v304, 0.0
  %v317 = vmax.f32 %v305, 0.0
  %v318 = vmax.f32 %v306, 0.0
  %v319 = vmax.f32 %v307, 0.0
  %v320 = vmax.f32 %v308, 0.0
  %v321 = vmax.f32 %v309, 0.0
  %v322 = vmax.f32 %v310, 0.0
  %v323 = vmax.f32 %v311, 0.0
  %324 = vst.msk [vmem:[%s4] sm:$0xff] %vm184, %v312
  %325 = vst.msk [vmem:[%s4 + $0x8] sm:$0xff] %vm184, %v313
  %326 = vst.msk [vmem:[%s4 + $0x10] sm:$0xff] %vm184, %v314
  %327 = vst.msk [vmem:[%s4 + $0x18] sm:$0xff] %vm184, %v315
  %328 = vst.msk [vmem:[%s4 + $0x20] sm:$0xff] %vm184, %v316
  %329 = vst.msk [vmem:[%s4 + $0x28] sm:$0xff] %vm184, %v317
  %330 = vst.msk [vmem:[%s4 + $0x30] sm:$0xff] %vm184, %v318
  %331 = vst.msk [vmem:[%s4 + $0x38] sm:$0xff] %vm184, %v319
  %332 = vst.msk [vmem:[%s4 + $0x40] sm:$0xff] %vm184, %v320
  %333 = vst.msk [vmem:[%s4 + $0x48] sm:$0xff] %vm184, %v321
  %334 = vst.msk [vmem:[%s4 + $0x50] sm:$0xff] %vm184, %v322
  %335 = vst.msk [vmem:[%s4 + $0x58] sm:$0xff] %vm184, %v323
  // Predicated region
  $region18: #{radar_block_forward.7} parent=0 // pred_check
    _
  $region19: #{radar_block_forward.7} parent=0 // pred_check_branch
    %337 = sbr.rel (0) target = $region21
  $region20: #{radar_block_forward.7} parent=0 // pred_region
    _
  $region21: #{radar_block_forward.7} parent=0 // pred_fallthru
    _
  // Predicated region
  $region22: #{radar_block_forward.7} parent=0 // pred_check
    _
  $region23: #{radar_block_forward.7} parent=0 // pred_check_branch
    %339 = sbr.rel (0) target = $region25
  $region24: #{radar_block_forward.7} parent=0 // pred_region
    _
  $region25: #{radar_block_forward.7} parent=0 // pred_fallthru
    _

// kernel: radar_block_forward.9
$region0: #{radar_block_forward.9}
  #allocation0 [shape = 'u32[]', space=smem, size = 0x4, offset = 0x4, fixed_abs, tag = 'smem constant byte address 0x4 - core index']
  #allocation1 [shape = 'u32[144,128]{1,0:T(1,128)}', space=vmem, size = 0x12000, scoped, tag = 'internal scratch']
  %s0 = inlined_call_operand.vmem [shape: bf16[8,72], index: 0, kind: input, shape index: {}]
  %s1 = inlined_call_operand.vmem [shape: bf16[72,16], index: 1, kind: input, shape index: {}]
  %s2 = inlined_call_operand.vmem [shape: f32[1,16], index: 2, kind: input, shape index: {}]
  %s3 = inlined_call_operand.vmem [shape: f32[1,16], index: 3, kind: input, shape index: {}]
  %s4 = inlined_call_operand.vmem [shape: f32[8,16], index: 4, kind: output, shape index: {}]
  %s5 = sld [smem:[#allocation0]]
  $region26: #{radar_block_forward.9} parent=0
    _
  %s7 = ssub.s32 1, %s5
  %s8 = scalar_select 0, %s7, %s5
  // Predicated region
  $region2: #{radar_block_forward.9} parent=0 // pred_check
    _
  $region3: #{radar_block_forward.9} parent=0 // pred_check_branch
    %10 = sbr.rel (0) target = $region5
  $region4: #{radar_block_forward.9} parent=0 // pred_region
    _
  $region5: #{radar_block_forward.9} parent=0 // pred_fallthru
    _
  // Predicated region
  $region6: #{radar_block_forward.9} parent=0 // pred_check
    _
  $region7: #{radar_block_forward.9} parent=0 // pred_check_branch
    %12 = sbr.rel (0) target = $region9
  $region8: #{radar_block_forward.9} parent=0 // pred_region
    _
  $region9: #{radar_block_forward.9} parent=0 // pred_fallthru
    _
  // Predicated region
  $region10: #{radar_block_forward.9} parent=0 // pred_check
    _
  $region11: #{radar_block_forward.9} parent=0 // pred_check_branch
    %14 = sbr.rel (0) target = $region13
  $region12: #{radar_block_forward.9} parent=0 // pred_region
    _
  $region13: #{radar_block_forward.9} parent=0 // pred_fallthru
    _
  // Predicated region
  $region14: #{radar_block_forward.9} parent=0 // pred_check
    _
  $region15: #{radar_block_forward.9} parent=0 // pred_check_branch
    %16 = sbr.rel (0) target = $region17
  $region16: #{radar_block_forward.9} parent=0 // pred_region
    _
  $region17: #{radar_block_forward.9} parent=0 // pred_fallthru
    _
  %v18 = vld [vmem:[%s0] sm:$0xf]
  %v19 = vld [vmem:[%s1] sm:$0xf]
  %v20 = vld [vmem:[%s1 + $0x4] sm:$0xf]
  %v21 = vld [vmem:[%s1 + $0x8] sm:$0xf]
  %v22 = vld [vmem:[%s1 + $0xc] sm:$0xf]
  %v23 = vld [vmem:[%s1 + $0x10] sm:$0xf]
  %v24 = vld [vmem:[%s1 + $0x14] sm:$0xf]
  %v25 = vld [vmem:[%s1 + $0x18] sm:$0xf]
  %v26 = vld [vmem:[%s1 + $0x1c] sm:$0xf]
  %v27 = vld [vmem:[%s1 + $0x20] sm:$0xf]
  %v37 = vunpack.c.l.b16 %v19
  %v38 = vunpack.c.l.b16 %v20
  %v39 = vunpack.c.l.b16 %v21
  %v40 = vunpack.c.l.b16 %v22
  %v41 = vunpack.c.l.b16 %v23
  %v42 = vunpack.c.l.b16 %v24
  %v43 = vunpack.c.l.b16 %v25
  %v44 = vunpack.c.l.b16 %v26
  %v45 = vunpack.c.l.b16 %v27
  %v46 = vpack.c.b16 %v38, %v37
  %v47 = vpack.c.b16 %v40, %v39
  %v48 = vpack.c.b16 %v42, %v41
  %v49 = vpack.c.b16 %v44, %v43
  %v50 = vpack.c.b16 %v45, %v45
  %vm55 = vcmask 588800
  %v57 = vsel %vm55, %v18, 0
  %vm59 = vcmask 1043456
  %v61 = vsel %vm59, %v50, 0
  %63 = vmatprep.subr.bf16.mxu0 0
  %64 = vmatpush1.bf16.msra.mxu0 %v46
  %65 = vmatprep.subr.bf16.mxu0 0
  %66 = vmatpush1.bf16.msra.mxu0 %v47
  %67 = vmatprep.subr.bf16.mxu0 0
  %68 = vmatpush1.bf16.msra.mxu0 %v48
  %69 = vmatprep.subr.bf16.mxu0 0
  %70 = vmatpush1.bf16.msra.mxu0 %v49
  %71 = vmatprep.subr.bf16.mxu0 0
  %72 = vmatpush1.bf16.msra.mxu0 %v61
  %73 = vmatprep.subr.bf16.mxu0 0
  %74 = vmatpush1.bf16.msra.mxu0 0
  %75 = vmatprep.subr.bf16.mxu0 0
  %76 = vmatpush1.bf16.msra.mxu0 0
  %77 = vmatprep.subr.bf16.mxu0 0
  %78 = vmatpush1.bf16.msra.mxu0 0
  %79 = vmatprep.subr.bf16.mxu0 0
  %80 = vmatpush1.bf16.msra.mxu0 0
  %81 = vmatprep.subr.bf16.mxu0 0
  %82 = vmatpush1.bf16.msra.mxu0 0
  %83 = vmatprep.subr.bf16.mxu0 0
  %84 = vmatpush1.bf16.msra.mxu0 0
  %85 = vmatprep.subr.bf16.mxu0 0
  %86 = vmatpush1.bf16.msra.mxu0 0
  %87 = vmatprep.subr.bf16.mxu0 0
  %88 = vmatpush1.bf16.msra.mxu0 0
  %89 = vmatprep.subr.bf16.mxu0 0
  %90 = vmatpush1.bf16.msra.mxu0 0
  %91 = vmatprep.subr.bf16.mxu0 0
  %92 = vmatpush1.bf16.msra.mxu0 0
  %93 = vmatprep.subr.bf16.mxu0 0
  %94 = vmatpush1.bf16.msra.mxu0 0
  %95 = vmatprep.mubr.bf16.mxu0 0
  %96 = vmatmul.mubr.bf16.gmra.mrb[0].mxu0 %v57
  %v97 = vpop.f32.mrb[0].mxu0
  %v98 = vadd.f32 0.0, %v97
  %v99 = vpop.f32.mrb[0].mxu0
  %v100 = vpop.f32.mrb[0].mxu0
  %v101 = vpop.f32.mrb[0].mxu0
  %102 = vdwg.mxu0
  %vm103 = vcmask 130048
  %v104 = vsel %vm103, %v98, 0.0
  %v105 = vrot.slane %v104, 4
  %v106 = vadd.f32 %v104, %v105
  %v107 = vrot.slane %v106, 2
  %v108 = vadd.f32 %v106, %v107
  %v109 = vrot.slane %v108, 1
  %v110 = vadd.f32 %v108, %v109
  %v111 = vmul.f32 %v110, 0.125
  %v112 = vsub.f32 %v98, %v111
  %v113 = vmul.f32 %v112, %v112
  %v114 = vsel %vm103, %v113, 0.0
  %v115 = vrot.slane %v114, 4
  %v116 = vadd.f32 %v114, %v115
  %v117 = vrot.slane %v116, 2
  %v118 = vadd.f32 %v116, %v117
  %v119 = vrot.slane %v118, 1
  %v120 = vadd.f32 %v118, %v119
  %v121 = vmul.f32 %v120, 0.125
  %v122 = vld [vmem:[%s2] sm:$0x1]
  %v123 = vadd.f32 %v121, 1e-05
  %v124 = vrsqrt.pop %v123
  %v125 = vmul.f32 %v122, %v124
  %v126 = vld [vmem:[%s3] sm:$0x1]
  %v127 = vmul.f32 %v111, %v125
  %v128 = vsub.f32 %v126, %v127
  %v130 = vlaneseq
  %v131 = vshrl.u32 %v130, 7
  %v132 = vsub.s32 0, %v131
  %v133 = vrot.slane %v125, %v132
  %v135 = vmul.f32 %v98, %v133
  %v137 = vlaneseq
  %v138 = vshrl.u32 %v137, 7
  %v139 = vsub.s32 0, %v138
  %v140 = vrot.slane %v128, %v139
  %v142 = vadd.f32 %v135, %v140
  %v143 = vmax.f32 %v142, 0.0
  %144 = vst.msk [vmem:[%s4] sm:$0xff] %vm103, %v143
  // Predicated region
  $region18: #{radar_block_forward.9} parent=0 // pred_check
    _
  $region19: #{radar_block_forward.9} parent=0 // pred_check_branch
    %146 = sbr.rel (0) target = $region21
  $region20: #{radar_block_forward.9} parent=0 // pred_region
    _
  $region21: #{radar_block_forward.9} parent=0 // pred_fallthru
    _
  // Predicated region
  $region22: #{radar_block_forward.9} parent=0 // pred_check
    _
  $region23: #{radar_block_forward.9} parent=0 // pred_check_branch
    %148 = sbr.rel (0) target = $region25
  $region24: #{radar_block_forward.9} parent=0 // pred_region
    _
  $region25: #{radar_block_forward.9} parent=0 // pred_fallthru
    _

// kernel: radar_block_forward.12
$region0: #{radar_block_forward.12}
  #allocation0 [shape = 'u32[]', space=smem, size = 0x4, offset = 0x4, fixed_abs, tag = 'smem constant byte address 0x4 - core index']
  #allocation1 [shape = 'u32[144,128]{1,0:T(1,128)}', space=vmem, size = 0x12000, scoped, tag = 'internal scratch']
  %s0 = inlined_call_operand.vmem [shape: bf16[8,16], index: 0, kind: input, shape index: {}]
  %s1 = inlined_call_operand.vmem [shape: bf16[16,128], index: 1, kind: input, shape index: {}]
  %s2 = inlined_call_operand.vmem [shape: f32[1,128], index: 2, kind: input, shape index: {}]
  %s3 = inlined_call_operand.vmem [shape: f32[8,128], index: 3, kind: output, shape index: {}]
  %s4 = sld [smem:[#allocation0]]
  $region22: #{radar_block_forward.12} parent=0
    _
  %s6 = ssub.s32 1, %s4
  %s7 = scalar_select 0, %s6, %s4
  // Predicated region
  $region2: #{radar_block_forward.12} parent=0 // pred_check
    _
  $region3: #{radar_block_forward.12} parent=0 // pred_check_branch
    %9 = sbr.rel (0) target = $region5
  $region4: #{radar_block_forward.12} parent=0 // pred_region
    _
  $region5: #{radar_block_forward.12} parent=0 // pred_fallthru
    _
  // Predicated region
  $region6: #{radar_block_forward.12} parent=0 // pred_check
    _
  $region7: #{radar_block_forward.12} parent=0 // pred_check_branch
    %11 = sbr.rel (0) target = $region9
  $region8: #{radar_block_forward.12} parent=0 // pred_region
    _
  $region9: #{radar_block_forward.12} parent=0 // pred_fallthru
    _
  // Predicated region
  $region10: #{radar_block_forward.12} parent=0 // pred_check
    _
  $region11: #{radar_block_forward.12} parent=0 // pred_check_branch
    %13 = sbr.rel (0) target = $region13
  $region12: #{radar_block_forward.12} parent=0 // pred_region
    _
  $region13: #{radar_block_forward.12} parent=0 // pred_fallthru
    _
  %v15 = vld [vmem:[%s0] sm:$0xf]
  %v16 = vld [vmem:[%s1] sm:$0xf]
  %v17 = vld [vmem:[%s1 + $0x4] sm:$0xf]
  %v18 = vld [vmem:[%s2] sm:$0x1]
  %v20 = vlaneseq
  %v21 = vshrl.u32 %v20, 7
  %v22 = vsub.s32 0, %v21
  %v23 = vrot.slane %v18, %v22
  %v27 = vunpack.c.l.b16 %v16
  %v28 = vunpack.c.l.b16 %v17
  %v29 = vpack.c.b16 %v28, %v27
  %vm31 = vcmask 130048
  %v33 = vsel %vm31, %v15, 0
  %35 = vmatprep.subr.bf16.mxu0 0
  %36 = vmatpush1.bf16.msra.mxu0 %v29
  %37 = vmatprep.subr.bf16.mxu0 0
  %38 = vmatpush1.bf16.msra.mxu0 0
  %39 = vmatprep.subr.bf16.mxu0 0
  %40 = vmatpush1.bf16.msra.mxu0 0
  %41 = vmatprep.subr.bf16.mxu0 0
  %42 = vmatpush1.bf16.msra.mxu0 0
  %43 = vmatprep.subr.bf16.mxu0 0
  %44 = vmatpush1.bf16.msra.mxu0 0
  %45 = vmatprep.subr.bf16.mxu0 0
  %46 = vmatpush1.bf16.msra.mxu0 0
  %47 = vmatprep.subr.bf16.mxu0 0
  %48 = vmatpush1.bf16.msra.mxu0 0
  %49 = vmatprep.subr.bf16.mxu0 0
  %50 = vmatpush1.bf16.msra.mxu0 0
  %51 = vmatprep.subr.bf16.mxu0 0
  %52 = vmatpush1.bf16.msra.mxu0 0
  %53 = vmatprep.subr.bf16.mxu0 0
  %54 = vmatpush1.bf16.msra.mxu0 0
  %55 = vmatprep.subr.bf16.mxu0 0
  %56 = vmatpush1.bf16.msra.mxu0 0
  %57 = vmatprep.subr.bf16.mxu0 0
  %58 = vmatpush1.bf16.msra.mxu0 0
  %59 = vmatprep.subr.bf16.mxu0 0
  %60 = vmatpush1.bf16.msra.mxu0 0
  %61 = vmatprep.subr.bf16.mxu0 0
  %62 = vmatpush1.bf16.msra.mxu0 0
  %63 = vmatprep.subr.bf16.mxu0 0
  %64 = vmatpush1.bf16.msra.mxu0 0
  %65 = vmatprep.subr.bf16.mxu0 0
  %66 = vmatpush1.bf16.msra.mxu0 0
  %67 = vmatprep.mubr.bf16.mxu0 0
  %68 = vmatmul.mubr.bf16.gmra.mrb[0].mxu0 %v33
  %v69 = vpop.f32.mrb[0].mxu0
  %v70 = vadd.f32 %v23, %v69
  %v71 = vpop.f32.mrb[0].mxu0
  %v72 = vpop.f32.mrb[0].mxu0
  %v73 = vpop.f32.mrb[0].mxu0
  %74 = vdwg.mxu0
  %75 = vst [vmem:[%s3] sm:$0xff] %v70
  // Predicated region
  $region14: #{radar_block_forward.12} parent=0 // pred_check
    _
  $region15: #{radar_block_forward.12} parent=0 // pred_check_branch
    %77 = sbr.rel (0) target = $region17
  $region16: #{radar_block_forward.12} parent=0 // pred_region
    _
  $region17: #{radar_block_forward.12} parent=0 // pred_fallthru
    _
  // Predicated region
  $region18: #{radar_block_forward.12} parent=0 // pred_check
    _
  $region19: #{radar_block_forward.12} parent=0 // pred_check_branch
    %79 = sbr.rel (0) target = $region21
  $region20: #{radar_block_forward.12} parent=0 // pred_region
    _
  $region21: #{radar_block_forward.12} parent=0 // pred_fallthru
    _

// kernel: radar_block_forward.11
$region0: #{radar_block_forward.11}
  #allocation0 [shape = 'u32[]', space=smem, size = 0x4, offset = 0x4, fixed_abs, tag = 'smem constant byte address 0x4 - core index']
  #allocation1 [shape = 'u32[144,128]{1,0:T(1,128)}', space=vmem, size = 0x12000, scoped, tag = 'internal scratch']
  %s0 = inlined_call_operand.vmem [shape: bf16[24,8], index: 0, kind: input, shape index: {}]
  %s1 = inlined_call_operand.vmem [shape: bf16[8,32], index: 1, kind: input, shape index: {}]
  %s2 = inlined_call_operand.vmem [shape: f32[1,32], index: 2, kind: input, shape index: {}]
  %s3 = inlined_call_operand.vmem [shape: f32[24,32], index: 3, kind: output, shape index: {}]
  %s4 = sld [smem:[#allocation0]]
  $region22: #{radar_block_forward.11} parent=0
    _
  %s6 = ssub.s32 1, %s4
  %s7 = scalar_select 0, %s6, %s4
  // Predicated region
  $region2: #{radar_block_forward.11} parent=0 // pred_check
    _
  $region3: #{radar_block_forward.11} parent=0 // pred_check_branch
    %9 = sbr.rel (0) target = $region5
  $region4: #{radar_block_forward.11} parent=0 // pred_region
    _
  $region5: #{radar_block_forward.11} parent=0 // pred_fallthru
    _
  // Predicated region
  $region6: #{radar_block_forward.11} parent=0 // pred_check
    _
  $region7: #{radar_block_forward.11} parent=0 // pred_check_branch
    %11 = sbr.rel (0) target = $region9
  $region8: #{radar_block_forward.11} parent=0 // pred_region
    _
  $region9: #{radar_block_forward.11} parent=0 // pred_fallthru
    _
  // Predicated region
  $region10: #{radar_block_forward.11} parent=0 // pred_check
    _
  $region11: #{radar_block_forward.11} parent=0 // pred_check_branch
    %13 = sbr.rel (0) target = $region13
  $region12: #{radar_block_forward.11} parent=0 // pred_region
    _
  $region13: #{radar_block_forward.11} parent=0 // pred_fallthru
    _
  %v15 = vld [vmem:[%s0] sm:$0xf]
  %v16 = vld [vmem:[%s0 + $0x4] sm:$0xf]
  %v17 = vld [vmem:[%s0 + $0x8] sm:$0xf]
  %v18 = vld [vmem:[%s1] sm:$0xf]
  %v19 = vld [vmem:[%s2] sm:$0x1]
  %v21 = vlaneseq
  %v22 = vshrl.u32 %v21, 7
  %v23 = vsub.s32 0, %v22
  %v24 = vrot.slane %v19, %v23
  %v29 = vunpack.c.l.b16 %v15
  %v30 = vunpack.c.l.b16 %v16
  %v31 = vunpack.c.l.b16 %v17
  %v32 = vpack.c.b16 %v30, %v29
  %v33 = vpack.c.b16 %v31, %v31
  %vm34 = vcmask 64512
  %v36 = vsel %vm34, %v32, 0
  %v39 = vsel %vm34, %v33, 0
  %vm41 = vcmask 1043456
  %v43 = vsel %vm41, %v18, 0
  %45 = vmatprep.subr.bf16.mxu0 0
  %46 = vmatpush1.bf16.msra.mxu0 %v43
  %47 = vmatprep.subr.bf16.mxu0 0
  %48 = vmatpush1.bf16.msra.mxu0 0
  %49 = vmatprep.subr.bf16.mxu0 0
  %50 = vmatpush1.bf16.msra.mxu0 0
  %51 = vmatprep.subr.bf16.mxu0 0
  %52 = vmatpush1.bf16.msra.mxu0 0
  %53 = vmatprep.subr.bf16.mxu0 0
  %54 = vmatpush1.bf16.msra.mxu0 0
  %55 = vmatprep.subr.bf16.mxu0 0
  %56 = vmatpush1.bf16.msra.mxu0 0
  %57 = vmatprep.subr.bf16.mxu0 0
  %58 = vmatpush1.bf16.msra.mxu0 0
  %59 = vmatprep.subr.bf16.mxu0 0
  %60 = vmatpush1.bf16.msra.mxu0 0
  %61 = vmatprep.subr.bf16.mxu0 0
  %62 = vmatpush1.bf16.msra.mxu0 0
  %63 = vmatprep.subr.bf16.mxu0 0
  %64 = vmatpush1.bf16.msra.mxu0 0
  %65 = vmatprep.subr.bf16.mxu0 0
  %66 = vmatpush1.bf16.msra.mxu0 0
  %67 = vmatprep.subr.bf16.mxu0 0
  %68 = vmatpush1.bf16.msra.mxu0 0
  %69 = vmatprep.subr.bf16.mxu0 0
  %70 = vmatpush1.bf16.msra.mxu0 0
  %71 = vmatprep.subr.bf16.mxu0 0
  %72 = vmatpush1.bf16.msra.mxu0 0
  %73 = vmatprep.subr.bf16.mxu0 0
  %74 = vmatpush1.bf16.msra.mxu0 0
  %75 = vmatprep.subr.bf16.mxu0 0
  %76 = vmatpush1.bf16.msra.mxu0 0
  %77 = vmatprep.mubr.bf16.mxu0 0
  %78 = vmatmul.mubr.bf16.gmra.mrb[0].mxu0 %v36
  %v79 = vpop.f32.mrb[0].mxu0
  %v80 = vadd.f32 %v24, %v79
  %v81 = vpop.f32.mrb[0].mxu0
  %v82 = vpop.f32.mrb[0].mxu0
  %v83 = vadd.f32 %v24, %v82
  %v84 = vpop.f32.mrb[0].mxu0
  %85 = vmatprep.mubr.bf16.mxu0 0
  %86 = vmatmul.mubr.bf16.gmra.mrb[0].mxu0 %v39
  %v87 = vpop.f32.mrb[0].mxu0
  %v88 = vadd.f32 %v24, %v87
  %v89 = vpop.f32.mrb[0].mxu0
  %v90 = vpop.f32.mrb[0].mxu0
  %v91 = vpop.f32.mrb[0].mxu0
  %92 = vdwg.mxu0
  %vm93 = vcmask 261120
  %94 = vst.msk [vmem:[%s3] sm:$0xff] %vm93, %v80
  %95 = vst.msk [vmem:[%s3 + $0x8] sm:$0xff] %vm93, %v83
  %96 = vst.msk [vmem:[%s3 + $0x10] sm:$0xff] %vm93, %v88
  // Predicated region
  $region14: #{radar_block_forward.11} parent=0 // pred_check
    _
  $region15: #{radar_block_forward.11} parent=0 // pred_check_branch
    %98 = sbr.rel (0) target = $region17
  $region16: #{radar_block_forward.11} parent=0 // pred_region
    _
  $region17: #{radar_block_forward.11} parent=0 // pred_fallthru
    _
  // Predicated region
  $region18: #{radar_block_forward.11} parent=0 // pred_check
    _
  $region19: #{radar_block_forward.11} parent=0 // pred_check_branch
    %100 = sbr.rel (0) target = $region21
  $region20: #{radar_block_forward.11} parent=0 // pred_region
    _
  $region21: #{radar_block_forward.11} parent=0 // pred_fallthru
    _

// kernel: radar_block_forward.10
$region0: #{radar_block_forward.10}
  #allocation0 [shape = 'u32[]', space=smem, size = 0x4, offset = 0x4, fixed_abs, tag = 'smem constant byte address 0x4 - core index']
  #allocation1 [shape = 'u32[144,128]{1,0:T(1,128)}', space=vmem, size = 0x12000, scoped, tag = 'internal scratch']
  %s0 = inlined_call_operand.vmem [shape: bf16[96,4], index: 0, kind: input, shape index: {}]
  %s1 = inlined_call_operand.vmem [shape: bf16[4,8], index: 1, kind: input, shape index: {}]
  %s2 = inlined_call_operand.vmem [shape: f32[1,8], index: 2, kind: input, shape index: {}]
  %s3 = inlined_call_operand.vmem [shape: f32[96,8], index: 3, kind: output, shape index: {}]
  %s4 = sld [smem:[#allocation0]]
  $region22: #{radar_block_forward.10} parent=0
    _
  %s6 = ssub.s32 1, %s4
  %s7 = scalar_select 0, %s6, %s4
  // Predicated region
  $region2: #{radar_block_forward.10} parent=0 // pred_check
    _
  $region3: #{radar_block_forward.10} parent=0 // pred_check_branch
    %9 = sbr.rel (0) target = $region5
  $region4: #{radar_block_forward.10} parent=0 // pred_region
    _
  $region5: #{radar_block_forward.10} parent=0 // pred_fallthru
    _
  // Predicated region
  $region6: #{radar_block_forward.10} parent=0 // pred_check
    _
  $region7: #{radar_block_forward.10} parent=0 // pred_check_branch
    %11 = sbr.rel (0) target = $region9
  $region8: #{radar_block_forward.10} parent=0 // pred_region
    _
  $region9: #{radar_block_forward.10} parent=0 // pred_fallthru
    _
  // Predicated region
  $region10: #{radar_block_forward.10} parent=0 // pred_check
    _
  $region11: #{radar_block_forward.10} parent=0 // pred_check_branch
    %13 = sbr.rel (0) target = $region13
  $region12: #{radar_block_forward.10} parent=0 // pred_region
    _
  $region13: #{radar_block_forward.10} parent=0 // pred_fallthru
    _
  %v15 = vld [vmem:[%s0] sm:$0xf]
  %v16 = vld [vmem:[%s0 + $0x4] sm:$0xf]
  %v17 = vld [vmem:[%s0 + $0x8] sm:$0xf]
  %v18 = vld [vmem:[%s0 + $0xc] sm:$0xf]
  %v19 = vld [vmem:[%s0 + $0x10] sm:$0xf]
  %v20 = vld [vmem:[%s0 + $0x14] sm:$0xf]
  %v21 = vld [vmem:[%s0 + $0x18] sm:$0xf]
  %v22 = vld [vmem:[%s0 + $0x1c] sm:$0xf]
  %v23 = vld [vmem:[%s0 + $0x20] sm:$0xf]
  %v24 = vld [vmem:[%s0 + $0x24] sm:$0xf]
  %v25 = vld [vmem:[%s0 + $0x28] sm:$0xf]
  %v26 = vld [vmem:[%s0 + $0x2c] sm:$0xf]
  %v27 = vld [vmem:[%s1] sm:$0x3]
  %v28 = vld [vmem:[%s2] sm:$0x1]
  %v30 = vlaneseq
  %v31 = vshrl.u32 %v30, 7
  %v32 = vsub.s32 0, %v31
  %v33 = vrot.slane %v28, %v32
  %v47 = vunpack.c.l.b16 %v15
  %v48 = vunpack.c.l.b16 %v16
  %v49 = vunpack.c.l.b16 %v17
  %v50 = vunpack.c.l.b16 %v18
  %v51 = vunpack.c.l.b16 %v19
  %v52 = vunpack.c.l.b16 %v20
  %v53 = vunpack.c.l.b16 %v21
  %v54 = vunpack.c.l.b16 %v22
  %v55 = vunpack.c.l.b16 %v23
  %v56 = vunpack.c.l.b16 %v24
  %v57 = vunpack.c.l.b16 %v25
  %v58 = vunpack.c.l.b16 %v26
  %v59 = vpack.c.b16 %v48, %v47
  %v60 = vpack.c.b16 %v50, %v49
  %v61 = vpack.c.b16 %v52, %v51
  %v62 = vpack.c.b16 %v54, %v53
  %v63 = vpack.c.b16 %v56, %v55
  %v64 = vpack.c.b16 %v58, %v57
  %vm65 = vcmask 31744
  %v67 = vsel %vm65, %v59, 0
  %v70 = vsel %vm65, %v60, 0
  %v73 = vsel %vm65, %v61, 0
  %v76 = vsel %vm65, %v62, 0
  %v79 = vsel %vm65, %v63, 0
  %v82 = vsel %vm65, %v64, 0
  %vm84 = vcmask 1041408
  %v86 = vsel %vm84, %v27, 0
  %88 = vmatprep.subr.bf16.mxu0 0
  %89 = vmatpush1.bf16.msra.mxu0 %v86
  %90 = vmatprep.subr.bf16.mxu0 0
  %91 = vmatpush1.bf16.msra.mxu0 0
  %92 = vmatprep.subr.bf16.mxu0 0
  %93 = vmatpush1.bf16.msra.mxu0 0
  %94 = vmatprep.subr.bf16.mxu0 0
  %95 = vmatpush1.bf16.msra.mxu0 0
  %96 = vmatprep.subr.bf16.mxu0 0
  %97 = vmatpush1.bf16.msra.mxu0 0
  %98 = vmatprep.subr.bf16.mxu0 0
  %99 = vmatpush1.bf16.msra.mxu0 0
  %100 = vmatprep.subr.bf16.mxu0 0
  %101 = vmatpush1.bf16.msra.mxu0 0
  %102 = vmatprep.subr.bf16.mxu0 0
  %103 = vmatpush1.bf16.msra.mxu0 0
  %104 = vmatprep.subr.bf16.mxu0 0
  %105 = vmatpush1.bf16.msra.mxu0 0
  %106 = vmatprep.subr.bf16.mxu0 0
  %107 = vmatpush1.bf16.msra.mxu0 0
  %108 = vmatprep.subr.bf16.mxu0 0
  %109 = vmatpush1.bf16.msra.mxu0 0
  %110 = vmatprep.subr.bf16.mxu0 0
  %111 = vmatpush1.bf16.msra.mxu0 0
  %112 = vmatprep.subr.bf16.mxu0 0
  %113 = vmatpush1.bf16.msra.mxu0 0
  %114 = vmatprep.subr.bf16.mxu0 0
  %115 = vmatpush1.bf16.msra.mxu0 0
  %116 = vmatprep.subr.bf16.mxu0 0
  %117 = vmatpush1.bf16.msra.mxu0 0
  %118 = vmatprep.subr.bf16.mxu0 0
  %119 = vmatpush1.bf16.msra.mxu0 0
  %120 = vmatprep.mubr.bf16.mxu0 0
  %121 = vmatmul.mubr.bf16.gmra.mrb[0].mxu0 %v67
  %v122 = vpop.f32.mrb[0].mxu0
  %v123 = vadd.f32 %v33, %v122
  %v124 = vpop.f32.mrb[0].mxu0
  %v125 = vpop.f32.mrb[0].mxu0
  %v126 = vadd.f32 %v33, %v125
  %v127 = vpop.f32.mrb[0].mxu0
  %128 = vmatprep.mubr.bf16.mxu0 0
  %129 = vmatmul.mubr.bf16.gmra.mrb[0].mxu0 %v70
  %v130 = vpop.f32.mrb[0].mxu0
  %v131 = vadd.f32 %v33, %v130
  %v132 = vpop.f32.mrb[0].mxu0
  %v133 = vpop.f32.mrb[0].mxu0
  %v134 = vadd.f32 %v33, %v133
  %v135 = vpop.f32.mrb[0].mxu0
  %136 = vmatprep.mubr.bf16.mxu0 0
  %137 = vmatmul.mubr.bf16.gmra.mrb[0].mxu0 %v73
  %v138 = vpop.f32.mrb[0].mxu0
  %v139 = vadd.f32 %v33, %v138
  %v140 = vpop.f32.mrb[0].mxu0
  %v141 = vpop.f32.mrb[0].mxu0
  %v142 = vadd.f32 %v33, %v141
  %v143 = vpop.f32.mrb[0].mxu0
  %144 = vmatprep.mubr.bf16.mxu0 0
  %145 = vmatmul.mubr.bf16.gmra.mrb[0].mxu0 %v76
  %v146 = vpop.f32.mrb[0].mxu0
  %v147 = vadd.f32 %v33, %v146
  %v148 = vpop.f32.mrb[0].mxu0
  %v149 = vpop.f32.mrb[0].mxu0
  %v150 = vadd.f32 %v33, %v149
  %v151 = vpop.f32.mrb[0].mxu0
  %152 = vmatprep.mubr.bf16.mxu0 0
  %153 = vmatmul.mubr.bf16.gmra.mrb[0].mxu0 %v79
  %v154 = vpop.f32.mrb[0].mxu0
  %v155 = vadd.f32 %v33, %v154
  %v156 = vpop.f32.mrb[0].mxu0
  %v157 = vpop.f32.mrb[0].mxu0
  %v158 = vadd.f32 %v33, %v157
  %v159 = vpop.f32.mrb[0].mxu0
  %160 = vmatprep.mubr.bf16.mxu0 0
  %161 = vmatmul.mubr.bf16.gmra.mrb[0].mxu0 %v82
  %v162 = vpop.f32.mrb[0].mxu0
  %v163 = vadd.f32 %v33, %v162
  %v164 = vpop.f32.mrb[0].mxu0
  %v165 = vpop.f32.mrb[0].mxu0
  %v166 = vadd.f32 %v33, %v165
  %v167 = vpop.f32.mrb[0].mxu0
  %168 = vdwg.mxu0
  %vm169 = vcmask 64512
  %170 = vst.msk [vmem:[%s3] sm:$0xff] %vm169, %v123
  %171 = vst.msk [vmem:[%s3 + $0x8] sm:$0xff] %vm169, %v126
  %172 = vst.msk [vmem:[%s3 + $0x10] sm:$0xff] %vm169, %v131
  %173 = vst.msk [vmem:[%s3 + $0x18] sm:$0xff] %vm169, %v134
  %174 = vst.msk [vmem:[%s3 + $0x20] sm:$0xff] %vm169, %v139
  %175 = vst.msk [vmem:[%s3 + $0x28] sm:$0xff] %vm169, %v142
  %176 = vst.msk [vmem:[%s3 + $0x30] sm:$0xff] %vm169, %v147
  %177 = vst.msk [vmem:[%s3 + $0x38] sm:$0xff] %vm169, %v150
  %178 = vst.msk [vmem:[%s3 + $0x40] sm:$0xff] %vm169, %v155
  %179 = vst.msk [vmem:[%s3 + $0x48] sm:$0xff] %vm169, %v158
  %180 = vst.msk [vmem:[%s3 + $0x50] sm:$0xff] %vm169, %v163
  %181 = vst.msk [vmem:[%s3 + $0x58] sm:$0xff] %vm169, %v166
  // Predicated region
  $region14: #{radar_block_forward.10} parent=0 // pred_check
    _
  $region15: #{radar_block_forward.10} parent=0 // pred_check_branch
    %183 = sbr.rel (0) target = $region17
  $region16: #{radar_block_forward.10} parent=0 // pred_region
    _
  $region17: #{radar_block_forward.10} parent=0 // pred_fallthru
    _
  // Predicated region
  $region18: #{radar_block_forward.10} parent=0 // pred_check
    _
  $region19: #{radar_block_forward.10} parent=0 // pred_check_branch
    %185 = sbr.rel (0) target = $region21
  $region20: #{radar_block_forward.10} parent=0 // pred_region
    _
  $region21: #{radar_block_forward.10} parent=0 // pred_fallthru
    _

// kernel: radar_block_forward.13
$region0: #{radar_block_forward.13}
  #allocation0 [shape = 'u32[]', space=smem, size = 0x4, offset = 0x4, fixed_abs, tag = 'smem constant byte address 0x4 - core index']
  #allocation1 [shape = 'u32[144,128]{1,0:T(1,128)}', space=vmem, size = 0x12000, scoped, tag = 'internal scratch']
  %s0 = inlined_call_operand.vmem [shape: bf16[96,24], index: 0, kind: input, shape index: {}]
  %s1 = inlined_call_operand.vmem [shape: bf16[24,96], index: 1, kind: input, shape index: {}]
  %s2 = inlined_call_operand.vmem [shape: f32[1,24], index: 2, kind: input, shape index: {}]
  %s3 = inlined_call_operand.vmem [shape: f32[1,24], index: 3, kind: input, shape index: {}]
  %s4 = inlined_call_operand.vmem [shape: f32[96,24], index: 4, kind: input, shape index: {}]
  %s5 = inlined_call_operand.vmem [shape: f32[24,96], index: 5, kind: input, shape index: {}]
  %s6 = inlined_call_operand.vmem [shape: f32[96,96], index: 6, kind: output, shape index: {}]
  %s7 = sld [smem:[#allocation0]]
  $region34: #{radar_block_forward.13} parent=0
    _
  %s9 = ssub.s32 1, %s7
  %s10 = scalar_select 0, %s9, %s7
  // Predicated region
  $region2: #{radar_block_forward.13} parent=0 // pred_check
    _
  $region3: #{radar_block_forward.13} parent=0 // pred_check_branch
    %12 = sbr.rel (0) target = $region5
  $region4: #{radar_block_forward.13} parent=0 // pred_region
    _
  $region5: #{radar_block_forward.13} parent=0 // pred_fallthru
    _
  // Predicated region
  $region6: #{radar_block_forward.13} parent=0 // pred_check
    _
  $region7: #{radar_block_forward.13} parent=0 // pred_check_branch
    %14 = sbr.rel (0) target = $region9
  $region8: #{radar_block_forward.13} parent=0 // pred_region
    _
  $region9: #{radar_block_forward.13} parent=0 // pred_fallthru
    _
  // Predicated region
  $region10: #{radar_block_forward.13} parent=0 // pred_check
    _
  $region11: #{radar_block_forward.13} parent=0 // pred_check_branch
    %16 = sbr.rel (0) target = $region13
  $region12: #{radar_block_forward.13} parent=0 // pred_region
    _
  $region13: #{radar_block_forward.13} parent=0 // pred_fallthru
    _
  // Predicated region
  $region14: #{radar_block_forward.13} parent=0 // pred_check
    _
  $region15: #{radar_block_forward.13} parent=0 // pred_check_branch
    %18 = sbr.rel (0) target = $region17
  $region16: #{radar_block_forward.13} parent=0 // pred_region
    _
  $region17: #{radar_block_forward.13} parent=0 // pred_fallthru
    _
  // Predicated region
  $region18: #{radar_block_forward.13} parent=0 // pred_check
    _
  $region19: #{radar_block_forward.13} parent=0 // pred_check_branch
    %20 = sbr.rel (0) target = $region21
  $region20: #{radar_block_forward.13} parent=0 // pred_region
    _
  $region21: #{radar_block_forward.13} parent=0 // pred_fallthru
    _
  // Predicated region
  $region22: #{radar_block_forward.13} parent=0 // pred_check
    _
  $region23: #{radar_block_forward.13} parent=0 // pred_check_branch
    %22 = sbr.rel (0) target = $region25
  $region24: #{radar_block_forward.13} parent=0 // pred_region
    _
  $region25: #{radar_block_forward.13} parent=0 // pred_fallthru
    _
  %v24 = vld [vmem:[%s0] sm:$0xf]
  %v25 = vld [vmem:[%s0 + $0x4] sm:$0xf]
  %v26 = vld [vmem:[%s0 + $0x8] sm:$0xf]
  %v27 = vld [vmem:[%s0 + $0xc] sm:$0xf]
  %v28 = vld [vmem:[%s0 + $0x10] sm:$0xf]
  %v29 = vld [vmem:[%s0 + $0x14] sm:$0xf]
  %v30 = vld [vmem:[%s0 + $0x18] sm:$0xf]
  %v31 = vld [vmem:[%s0 + $0x1c] sm:$0xf]
  %v32 = vld [vmem:[%s0 + $0x20] sm:$0xf]
  %v33 = vld [vmem:[%s0 + $0x24] sm:$0xf]
  %v34 = vld [vmem:[%s0 + $0x28] sm:$0xf]
  %v35 = vld [vmem:[%s0 + $0x2c] sm:$0xf]
  %v36 = vld [vmem:[%s1] sm:$0xf]
  %v37 = vld [vmem:[%s1 + $0x4] sm:$0xf]
  %v38 = vld [vmem:[%s1 + $0x8] sm:$0xf]
  %v51 = vunpack.c.l.b16 %v24
  %v52 = vunpack.c.l.b16 %v25
  %v53 = vunpack.c.l.b16 %v26
  %v54 = vunpack.c.l.b16 %v27
  %v55 = vunpack.c.l.b16 %v28
  %v56 = vunpack.c.l.b16 %v29
  %v57 = vunpack.c.l.b16 %v30
  %v58 = vunpack.c.l.b16 %v31
  %v59 = vunpack.c.l.b16 %v32
  %v60 = vunpack.c.l.b16 %v33
  %v61 = vunpack.c.l.b16 %v34
  %v62 = vunpack.c.l.b16 %v35
  %v63 = vpack.c.b16 %v52, %v51
  %v64 = vpack.c.b16 %v54, %v53
  %v65 = vpack.c.b16 %v56, %v55
  %v66 = vpack.c.b16 %v58, %v57
  %v67 = vpack.c.b16 %v60, %v59
  %v68 = vpack.c.b16 %v62, %v61
  %v72 = vunpack.c.l.b16 %v36
  %v73 = vunpack.c.l.b16 %v37
  %v74 = vunpack.c.l.b16 %v38
  %v75 = vpack.c.b16 %v73, %v72
  %v76 = vpack.c.b16 %v74, %v74
  %vm78 = vcmask 195584
  %v80 = vsel %vm78, %v63, 0
  %v83 = vsel %vm78, %v64, 0
  %v86 = vsel %vm78, %v65, 0
  %v89 = vsel %vm78, %v66, 0
  %v92 = vsel %vm78, %v67, 0
  %v95 = vsel %vm78, %v68, 0
  %vm97 = vcmask 1043456
  %v99 = vsel %vm97, %v76, 0
  %101 = vmatprep.subr.bf16.mxu0 0
  %102 = vmatpush1.bf16.msra.mxu0 %v75
  %103 = vmatprep.subr.bf16.mxu0 0
  %104 = vmatpush1.bf16.msra.mxu0 %v99
  %105 = vmatprep.subr.bf16.mxu0 0
  %106 = vmatpush1.bf16.msra.mxu0 0
  %107 = vmatprep.subr.bf16.mxu0 0
  %108 = vmatpush1.bf16.msra.mxu0 0
  %109 = vmatprep.subr.bf16.mxu0 0
  %110 = vmatpush1.bf16.msra.mxu0 0
  %111 = vmatprep.subr.bf16.mxu0 0
  %112 = vmatpush1.bf16.msra.mxu0 0
  %113 = vmatprep.subr.bf16.mxu0 0
  %114 = vmatpush1.bf16.msra.mxu0 0
  %115 = vmatprep.subr.bf16.mxu0 0
  %116 = vmatpush1.bf16.msra.mxu0 0
  %117 = vmatprep.subr.bf16.mxu0 0
  %118 = vmatpush1.bf16.msra.mxu0 0
  %119 = vmatprep.subr.bf16.mxu0 0
  %120 = vmatpush1.bf16.msra.mxu0 0
  %121 = vmatprep.subr.bf16.mxu0 0
  %122 = vmatpush1.bf16.msra.mxu0 0
  %123 = vmatprep.subr.bf16.mxu0 0
  %124 = vmatpush1.bf16.msra.mxu0 0
  %125 = vmatprep.subr.bf16.mxu0 0
  %126 = vmatpush1.bf16.msra.mxu0 0
  %127 = vmatprep.subr.bf16.mxu0 0
  %128 = vmatpush1.bf16.msra.mxu0 0
  %129 = vmatprep.subr.bf16.mxu0 0
  %130 = vmatpush1.bf16.msra.mxu0 0
  %131 = vmatprep.subr.bf16.mxu0 0
  %132 = vmatpush1.bf16.msra.mxu0 0
  %133 = vmatprep.mubr.bf16.mxu0 0
  %134 = vmatmul.mubr.bf16.gmra.mrb[0].mxu0 %v80
  %v135 = vpop.f32.mrb[0].mxu0
  %v136 = vadd.f32 0.0, %v135
  %v137 = vpop.f32.mrb[0].mxu0
  %v138 = vpop.f32.mrb[0].mxu0
  %v139 = vadd.f32 0.0, %v138
  %v140 = vpop.f32.mrb[0].mxu0
  %141 = vmatprep.mubr.bf16.mxu0 0
  %142 = vmatmul.mubr.bf16.gmra.mrb[0].mxu0 %v83
  %v143 = vpop.f32.mrb[0].mxu0
  %v144 = vadd.f32 0.0, %v143
  %v145 = vpop.f32.mrb[0].mxu0
  %v146 = vpop.f32.mrb[0].mxu0
  %v147 = vadd.f32 0.0, %v146
  %v148 = vpop.f32.mrb[0].mxu0
  %149 = vmatprep.mubr.bf16.mxu0 0
  %150 = vmatmul.mubr.bf16.gmra.mrb[0].mxu0 %v86
  %v151 = vpop.f32.mrb[0].mxu0
  %v152 = vadd.f32 0.0, %v151
  %v153 = vpop.f32.mrb[0].mxu0
  %v154 = vpop.f32.mrb[0].mxu0
  %v155 = vadd.f32 0.0, %v154
  %v156 = vpop.f32.mrb[0].mxu0
  %157 = vmatprep.mubr.bf16.mxu0 0
  %158 = vmatmul.mubr.bf16.gmra.mrb[0].mxu0 %v89
  %v159 = vpop.f32.mrb[0].mxu0
  %v160 = vadd.f32 0.0, %v159
  %v161 = vpop.f32.mrb[0].mxu0
  %v162 = vpop.f32.mrb[0].mxu0
  %v163 = vadd.f32 0.0, %v162
  %v164 = vpop.f32.mrb[0].mxu0
  %165 = vmatprep.mubr.bf16.mxu0 0
  %166 = vmatmul.mubr.bf16.gmra.mrb[0].mxu0 %v92
  %v167 = vpop.f32.mrb[0].mxu0
  %v168 = vadd.f32 0.0, %v167
  %v169 = vpop.f32.mrb[0].mxu0
  %v170 = vpop.f32.mrb[0].mxu0
  %v171 = vadd.f32 0.0, %v170
  %v172 = vpop.f32.mrb[0].mxu0
  %173 = vmatprep.mubr.bf16.mxu0 0
  %174 = vmatmul.mubr.bf16.gmra.mrb[0].mxu0 %v95
  %v175 = vpop.f32.mrb[0].mxu0
  %v176 = vadd.f32 0.0, %v175
  %v177 = vpop.f32.mrb[0].mxu0
  %v178 = vpop.f32.mrb[0].mxu0
  %v179 = vadd.f32 0.0, %v178
  %v180 = vpop.f32.mrb[0].mxu0
  %181 = vdwg.mxu0
  %vm182 = vcmask 785408
  %v183 = vsel %vm182, %v136, 0.0
  %v184 = vsel %vm182, %v139, 0.0
  %v185 = vadd.f32 %v183, %v184
  %v186 = vsel %vm182, %v144, 0.0
  %v187 = vadd.f32 %v185, %v186
  %v188 = vsel %vm182, %v147, 0.0
  %v189 = vadd.f32 %v187, %v188
  %v190 = vsel %vm182, %v152, 0.0
  %v191 = vadd.f32 %v189, %v190
  %v192 = vsel %vm182, %v155, 0.0
  %v193 = vadd.f32 %v191, %v192
  %v194 = vsel %vm182, %v160, 0.0
  %v195 = vadd.f32 %v193, %v194
  %v196 = vsel %vm182, %v163, 0.0
  %v197 = vadd.f32 %v195, %v196
  %v198 = vsel %vm182, %v168, 0.0
  %v199 = vadd.f32 %v197, %v198
  %v200 = vsel %vm182, %v171, 0.0
  %v201 = vadd.f32 %v199, %v200
  %v202 = vsel %vm182, %v176, 0.0
  %v203 = vadd.f32 %v201, %v202
  %v204 = vsel %vm182, %v179, 0.0
  %v205 = vadd.f32 %v203, %v204
  %v206 = vrot.slane %v205, 4
  %v207 = vadd.f32 %v205, %v206
  %v208 = vrot.slane %v207, 2
  %v209 = vadd.f32 %v207, %v208
  %v210 = vrot.slane %v209, 1
  %v211 = vadd.f32 %v209, %v210
  %v212 = vld [vmem:[%s4] sm:$0xff]
  %v213 = vld [vmem:[%s4 + $0x8] sm:$0xff]
  %v214 = vld [vmem:[%s4 + $0x10] sm:$0xff]
  %v215 = vld [vmem:[%s4 + $0x18] sm:$0xff]
  %v216 = vld [vmem:[%s4 + $0x20] sm:$0xff]
  %v217 = vld [vmem:[%s4 + $0x28] sm:$0xff]
  %v218 = vld [vmem:[%s4 + $0x30] sm:$0xff]
  %v219 = vld [vmem:[%s4 + $0x38] sm:$0xff]
  %v220 = vld [vmem:[%s4 + $0x40] sm:$0xff]
  %v221 = vld [vmem:[%s4 + $0x48] sm:$0xff]
  %v222 = vld [vmem:[%s4 + $0x50] sm:$0xff]
  %v223 = vld [vmem:[%s4 + $0x58] sm:$0xff]
  %v225 = vsel %vm182, %v211, 0
  %227 = vmatprep.subr.mxu0 0.0
  %228 = vmatpush1.msra.mxu0 %v212
  %229 = vmatprep.subr.mxu0 0.0
  %230 = vmatpush1.msra.mxu0 %v213
  %231 = vmatprep.subr.mxu0 0.0
  %232 = vmatpush1.msra.mxu0 %v214
  %233 = vmatprep.subr.mxu0 0.0
  %234 = vmatpush1.msra.mxu0 %v215
  %235 = vmatprep.subr.mxu0 0.0
  %236 = vmatpush1.msra.mxu0 %v216
  %237 = vmatprep.subr.mxu0 0.0
  %238 = vmatpush1.msra.mxu0 %v217
  %239 = vmatprep.subr.mxu0 0.0
  %240 = vmatpush1.msra.mxu0 %v218
  %241 = vmatprep.subr.mxu0 0.0
  %242 = vmatpush1.msra.mxu0 %v219
  %243 = vmatprep.subr.mxu0 0.0
  %244 = vmatpush1.msra.mxu0 %v220
  %245 = vmatprep.subr.mxu0 0.0
  %246 = vmatpush1.msra.mxu0 %v221
  %247 = vmatprep.subr.mxu0 0.0
  %248 = vmatpush1.msra.mxu0 %v222
  %249 = vmatprep.subr.mxu0 0.0
  %250 = vmatpush1.msra.mxu0 %v223
  %251 = vmatprep.subr.mxu0 0.0
  %252 = vmatpush1.msra.mxu0 0.0
  %253 = vmatprep.subr.mxu0 0.0
  %254 = vmatpush1.msra.mxu0 0.0
  %255 = vmatprep.subr.mxu0 0.0
  %256 = vmatpush1.msra.mxu0 0.0
  %257 = vmatprep.subr.mxu0 0.0
  %258 = vmatpush1.msra.mxu0 0.0
  %259 = vmatprep.subr.mxu0 0.0
  %260 = vmatpush1.msra.mxu0 0.0
  %261 = vmatprep.subr.mxu0 0.0
  %262 = vmatpush1.msra.mxu0 0.0
  %263 = vmatprep.subr.mxu0 0.0
  %264 = vmatpush1.msra.mxu0 0.0
  %265 = vmatprep.subr.mxu0 0.0
  %266 = vmatpush1.msra.mxu0 0.0
  %267 = vmatprep.subr.mxu0 0.0
  %268 = vmatpush1.msra.mxu0 0.0
  %269 = vmatprep.subr.mxu0 0.0
  %270 = vmatpush1.msra.mxu0 0.0
  %271 = vmatprep.subr.mxu0 0.0
  %272 = vmatpush1.msra.mxu0 0.0
  %273 = vmatprep.subr.mxu0 0.0
  %274 = vmatpush1.msra.mxu0 0.0
  %275 = vmatprep.subr.mxu0 0.0
  %276 = vmatpush1.msra.mxu0 0.0
  %277 = vmatprep.subr.mxu0 0.0
  %278 = vmatpush1.msra.mxu0 0.0
  %279 = vmatprep.subr.mxu0 0.0
  %280 = vmatpush1.msra.mxu0 0.0
  %281 = vmatprep.subr.mxu0 0.0
  %282 = vmatpush1.msra.mxu0 0.0
  %283 = vmatprep.subr.mxu0 0.0
  %284 = vmatpush1.msra.mxu0 0.0
  %285 = vmatprep.subr.mxu0 0.0
  %286 = vmatpush1.msra.mxu0 0.0
  %287 = vmatprep.subr.mxu0 0.0
  %288 = vmatpush1.msra.mxu0 0.0
  %289 = vmatprep.subr.mxu0 0.0
  %290 = vmatpush1.msra.mxu0 0.0
  %291 = vmatprep.mubr.f32.mxu0 0.0
  %292 = vmatmul.mubr.f32.gmra.mrb[0].mxu0 %v225
  %v293 = vpop.f32.mrb[0].mxu0
  %v294 = vadd.f32 0.0, %v293
  %v295 = vpop.f32.mrb[0].mxu0
  %296 = vdwg.mxu0
  %v297 = vmul.f32 %v294, 0.0026041667
  %v298 = vld [vmem:[%s5] sm:$0xff]
  %v299 = vld [vmem:[%s5 + $0x8] sm:$0xff]
  %v300 = vld [vmem:[%s5 + $0x10] sm:$0xff]
  %v302 = vsel %vm78, %v297, 0
  %304 = vmatprep.subr.mxu0 0.0
  %305 = vmatpush1.msra.mxu0 %v298
  %306 = vmatprep.subr.mxu0 0.0
  %307 = vmatpush1.msra.mxu0 %v299
  %308 = vmatprep.subr.mxu0 0.0
  %309 = vmatpush1.msra.mxu0 %v300
  %310 = vmatprep.subr.mxu0 0.0
  %311 = vmatpush1.msra.mxu0 0.0
  %312 = vmatprep.subr.mxu0 0.0
  %313 = vmatpush1.msra.mxu0 0.0
  %314 = vmatprep.subr.mxu0 0.0
  %315 = vmatpush1.msra.mxu0 0.0
  %316 = vmatprep.subr.mxu0 0.0
  %317 = vmatpush1.msra.mxu0 0.0
  %318 = vmatprep.subr.mxu0 0.0
  %319 = vmatpush1.msra.mxu0 0.0
  %320 = vmatprep.subr.mxu0 0.0
  %321 = vmatpush1.msra.mxu0 0.0
  %322 = vmatprep.subr.mxu0 0.0
  %323 = vmatpush1.msra.mxu0 0.0
  %324 = vmatprep.subr.mxu0 0.0
  %325 = vmatpush1.msra.mxu0 0.0
  %326 = vmatprep.subr.mxu0 0.0
  %327 = vmatpush1.msra.mxu0 0.0
  %328 = vmatprep.subr.mxu0 0.0
  %329 = vmatpush1.msra.mxu0 0.0
  %330 = vmatprep.subr.mxu0 0.0
  %331 = vmatpush1.msra.mxu0 0.0
  %332 = vmatprep.subr.mxu0 0.0
  %333 = vmatpush1.msra.mxu0 0.0
  %334 = vmatprep.subr.mxu0 0.0
  %335 = vmatpush1.msra.mxu0 0.0
  %336 = vmatprep.subr.mxu0 0.0
  %337 = vmatpush1.msra.mxu0 0.0
  %338 = vmatprep.subr.mxu0 0.0
  %339 = vmatpush1.msra.mxu0 0.0
  %340 = vmatprep.subr.mxu0 0.0
  %341 = vmatpush1.msra.mxu0 0.0
  %342 = vmatprep.subr.mxu0 0.0
  %343 = vmatpush1.msra.mxu0 0.0
  %344 = vmatprep.subr.mxu0 0.0
  %345 = vmatpush1.msra.mxu0 0.0
  %346 = vmatprep.subr.mxu0 0.0
  %347 = vmatpush1.msra.mxu0 0.0
  %348 = vmatprep.subr.mxu0 0.0
  %349 = vmatpush1.msra.mxu0 0.0
  %350 = vmatprep.subr.mxu0 0.0
  %351 = vmatpush1.msra.mxu0 0.0
  %352 = vmatprep.subr.mxu0 0.0
  %353 = vmatpush1.msra.mxu0 0.0
  %354 = vmatprep.subr.mxu0 0.0
  %355 = vmatpush1.msra.mxu0 0.0
  %356 = vmatprep.subr.mxu0 0.0
  %357 = vmatpush1.msra.mxu0 0.0
  %358 = vmatprep.subr.mxu0 0.0
  %359 = vmatpush1.msra.mxu0 0.0
  %360 = vmatprep.subr.mxu0 0.0
  %361 = vmatpush1.msra.mxu0 0.0
  %362 = vmatprep.subr.mxu0 0.0
  %363 = vmatpush1.msra.mxu0 0.0
  %364 = vmatprep.subr.mxu0 0.0
  %365 = vmatpush1.msra.mxu0 0.0
  %366 = vmatprep.subr.mxu0 0.0
  %367 = vmatpush1.msra.mxu0 0.0
  %368 = vmatprep.mubr.f32.mxu0 0.0
  %369 = vmatmul.mubr.f32.gmra.mrb[0].mxu0 %v302
  %v370 = vpop.f32.mrb[0].mxu0
  %v371 = vadd.f32 0.0, %v370
  %v372 = vpop.f32.mrb[0].mxu0
  %373 = vdwg.mxu0
  %v374 = vlaneseq
  %v375 = vshrl.u32 %v374, 7
  %v376 = vsub.s32 0, %v375
  %v377 = vrot.slane %v371, %v376
  %v378 = vsub.f32 %v136, %v377
  %v379 = vsub.f32 %v139, %v377
  %v380 = vsub.f32 %v144, %v377
  %v381 = vsub.f32 %v147, %v377
  %v382 = vsub.f32 %v152, %v377
  %v383 = vsub.f32 %v155, %v377
  %v384 = vsub.f32 %v160, %v377
  %v385 = vsub.f32 %v163, %v377
  %v386 = vsub.f32 %v168, %v377
  %v387 = vsub.f32 %v171, %v377
  %v388 = vsub.f32 %v176, %v377
  %v389 = vsub.f32 %v179, %v377
  %v390 = vmul.f32 %v378, %v378
  %v391 = vmul.f32 %v379, %v379
  %v392 = vmul.f32 %v380, %v380
  %v393 = vmul.f32 %v381, %v381
  %v394 = vmul.f32 %v382, %v382
  %v395 = vmul.f32 %v383, %v383
  %v396 = vmul.f32 %v384, %v384
  %v397 = vmul.f32 %v385, %v385
  %v398 = vmul.f32 %v386, %v386
  %v399 = vmul.f32 %v387, %v387
  %v400 = vmul.f32 %v388, %v388
  %v401 = vmul.f32 %v389, %v389
  %v402 = vsel %vm182, %v390, 0.0
  %v403 = vsel %vm182, %v391, 0.0
  %v404 = vadd.f32 %v402, %v403
  %v405 = vsel %vm182, %v392, 0.0
  %v406 = vadd.f32 %v404, %v405
  %v407 = vsel %vm182, %v393, 0.0
  %v408 = vadd.f32 %v406, %v407
  %v409 = vsel %vm182, %v394, 0.0
  %v410 = vadd.f32 %v408, %v409
  %v411 = vsel %vm182, %v395, 0.0
  %v412 = vadd.f32 %v410, %v411
  %v413 = vsel %vm182, %v396, 0.0
  %v414 = vadd.f32 %v412, %v413
  %v415 = vsel %vm182, %v397, 0.0
  %v416 = vadd.f32 %v414, %v415
  %v417 = vsel %vm182, %v398, 0.0
  %v418 = vadd.f32 %v416, %v417
  %v419 = vsel %vm182, %v399, 0.0
  %v420 = vadd.f32 %v418, %v419
  %v421 = vsel %vm182, %v400, 0.0
  %v422 = vadd.f32 %v420, %v421
  %v423 = vsel %vm182, %v401, 0.0
  %v424 = vadd.f32 %v422, %v423
  %v425 = vrot.slane %v424, 4
  %v426 = vadd.f32 %v424, %v425
  %v427 = vrot.slane %v426, 2
  %v428 = vadd.f32 %v426, %v427
  %v429 = vrot.slane %v428, 1
  %v430 = vadd.f32 %v428, %v429
  %v432 = vsel %vm182, %v430, 0
  %434 = vmatprep.subr.mxu0 0.0
  %435 = vmatpush1.msra.mxu0 %v212
  %436 = vmatprep.subr.mxu0 0.0
  %437 = vmatpush1.msra.mxu0 %v213
  %438 = vmatprep.subr.mxu0 0.0
  %439 = vmatpush1.msra.mxu0 %v214
  %440 = vmatprep.subr.mxu0 0.0
  %441 = vmatpush1.msra.mxu0 %v215
  %442 = vmatprep.subr.mxu0 0.0
  %443 = vmatpush1.msra.mxu0 %v216
  %444 = vmatprep.subr.mxu0 0.0
  %445 = vmatpush1.msra.mxu0 %v217
  %446 = vmatprep.subr.mxu0 0.0
  %447 = vmatpush1.msra.mxu0 %v218
  %448 = vmatprep.subr.mxu0 0.0
  %449 = vmatpush1.msra.mxu0 %v219
  %450 = vmatprep.subr.mxu0 0.0
  %451 = vmatpush1.msra.mxu0 %v220
  %452 = vmatprep.subr.mxu0 0.0
  %453 = vmatpush1.msra.mxu0 %v221
  %454 = vmatprep.subr.mxu0 0.0
  %455 = vmatpush1.msra.mxu0 %v222
  %456 = vmatprep.subr.mxu0 0.0
  %457 = vmatpush1.msra.mxu0 %v223
  %458 = vmatprep.subr.mxu0 0.0
  %459 = vmatpush1.msra.mxu0 0.0
  %460 = vmatprep.subr.mxu0 0.0
  %461 = vmatpush1.msra.mxu0 0.0
  %462 = vmatprep.subr.mxu0 0.0
  %463 = vmatpush1.msra.mxu0 0.0
  %464 = vmatprep.subr.mxu0 0.0
  %465 = vmatpush1.msra.mxu0 0.0
  %466 = vmatprep.subr.mxu0 0.0
  %467 = vmatpush1.msra.mxu0 0.0
  %468 = vmatprep.subr.mxu0 0.0
  %469 = vmatpush1.msra.mxu0 0.0
  %470 = vmatprep.subr.mxu0 0.0
  %471 = vmatpush1.msra.mxu0 0.0
  %472 = vmatprep.subr.mxu0 0.0
  %473 = vmatpush1.msra.mxu0 0.0
  %474 = vmatprep.subr.mxu0 0.0
  %475 = vmatpush1.msra.mxu0 0.0
  %476 = vmatprep.subr.mxu0 0.0
  %477 = vmatpush1.msra.mxu0 0.0
  %478 = vmatprep.subr.mxu0 0.0
  %479 = vmatpush1.msra.mxu0 0.0
  %480 = vmatprep.subr.mxu0 0.0
  %481 = vmatpush1.msra.mxu0 0.0
  %482 = vmatprep.subr.mxu0 0.0
  %483 = vmatpush1.msra.mxu0 0.0
  %484 = vmatprep.subr.mxu0 0.0
  %485 = vmatpush1.msra.mxu0 0.0
  %486 = vmatprep.subr.mxu0 0.0
  %487 = vmatpush1.msra.mxu0 0.0
  %488 = vmatprep.subr.mxu0 0.0
  %489 = vmatpush1.msra.mxu0 0.0
  %490 = vmatprep.subr.mxu0 0.0
  %491 = vmatpush1.msra.mxu0 0.0
  %492 = vmatprep.subr.mxu0 0.0
  %493 = vmatpush1.msra.mxu0 0.0
  %494 = vmatprep.subr.mxu0 0.0
  %495 = vmatpush1.msra.mxu0 0.0
  %496 = vmatprep.subr.mxu0 0.0
  %497 = vmatpush1.msra.mxu0 0.0
  %498 = vmatprep.mubr.f32.mxu0 0.0
  %499 = vmatmul.mubr.f32.gmra.mrb[0].mxu0 %v432
  %v500 = vpop.f32.mrb[0].mxu0
  %v501 = vadd.f32 0.0, %v500
  %v502 = vpop.f32.mrb[0].mxu0
  %503 = vdwg.mxu0
  %v504 = vmul.f32 %v501, 0.0026041667
  %v505 = vld [vmem:[%s2] sm:$0x1]
  %v506 = vadd.f32 %v504, 1e-05
  %v507 = vrsqrt.pop %v506
  %v508 = vmul.f32 %v505, %v507
  %v509 = vld [vmem:[%s3] sm:$0x1]
  %v510 = vmul.f32 %v297, %v508
  %v511 = vsub.f32 %v509, %v510
  %v513 = vsel %vm78, %v508, 0
  %515 = vmatprep.subr.mxu0 0.0
  %516 = vmatpush1.msra.mxu0 %v298
  %517 = vmatprep.subr.mxu0 0.0
  %518 = vmatpush1.msra.mxu0 %v299
  %519 = vmatprep.subr.mxu0 0.0
  %520 = vmatpush1.msra.mxu0 %v300
  %521 = vmatprep.subr.mxu0 0.0
  %522 = vmatpush1.msra.mxu0 0.0
  %523 = vmatprep.subr.mxu0 0.0
  %524 = vmatpush1.msra.mxu0 0.0
  %525 = vmatprep.subr.mxu0 0.0
  %526 = vmatpush1.msra.mxu0 0.0
  %527 = vmatprep.subr.mxu0 0.0
  %528 = vmatpush1.msra.mxu0 0.0
  %529 = vmatprep.subr.mxu0 0.0
  %530 = vmatpush1.msra.mxu0 0.0
  %531 = vmatprep.subr.mxu0 0.0
  %532 = vmatpush1.msra.mxu0 0.0
  %533 = vmatprep.subr.mxu0 0.0
  %534 = vmatpush1.msra.mxu0 0.0
  %535 = vmatprep.subr.mxu0 0.0
  %536 = vmatpush1.msra.mxu0 0.0
  %537 = vmatprep.subr.mxu0 0.0
  %538 = vmatpush1.msra.mxu0 0.0
  %539 = vmatprep.subr.mxu0 0.0
  %540 = vmatpush1.msra.mxu0 0.0
  %541 = vmatprep.subr.mxu0 0.0
  %542 = vmatpush1.msra.mxu0 0.0
  %543 = vmatprep.subr.mxu0 0.0
  %544 = vmatpush1.msra.mxu0 0.0
  %545 = vmatprep.subr.mxu0 0.0
  %546 = vmatpush1.msra.mxu0 0.0
  %547 = vmatprep.subr.mxu0 0.0
  %548 = vmatpush1.msra.mxu0 0.0
  %549 = vmatprep.subr.mxu0 0.0
  %550 = vmatpush1.msra.mxu0 0.0
  %551 = vmatprep.subr.mxu0 0.0
  %552 = vmatpush1.msra.mxu0 0.0
  %553 = vmatprep.subr.mxu0 0.0
  %554 = vmatpush1.msra.mxu0 0.0
  %555 = vmatprep.subr.mxu0 0.0
  %556 = vmatpush1.msra.mxu0 0.0
  %557 = vmatprep.subr.mxu0 0.0
  %558 = vmatpush1.msra.mxu0 0.0
  %559 = vmatprep.subr.mxu0 0.0
  %560 = vmatpush1.msra.mxu0 0.0
  %561 = vmatprep.subr.mxu0 0.0
  %562 = vmatpush1.msra.mxu0 0.0
  %563 = vmatprep.subr.mxu0 0.0
  %564 = vmatpush1.msra.mxu0 0.0
  %565 = vmatprep.subr.mxu0 0.0
  %566 = vmatpush1.msra.mxu0 0.0
  %567 = vmatprep.subr.mxu0 0.0
  %568 = vmatpush1.msra.mxu0 0.0
  %569 = vmatprep.subr.mxu0 0.0
  %570 = vmatpush1.msra.mxu0 0.0
  %571 = vmatprep.subr.mxu0 0.0
  %572 = vmatpush1.msra.mxu0 0.0
  %573 = vmatprep.subr.mxu0 0.0
  %574 = vmatpush1.msra.mxu0 0.0
  %575 = vmatprep.subr.mxu0 0.0
  %576 = vmatpush1.msra.mxu0 0.0
  %577 = vmatprep.subr.mxu0 0.0
  %578 = vmatpush1.msra.mxu0 0.0
  %579 = vmatprep.mubr.f32.mxu0 0.0
  %580 = vmatmul.mubr.f32.gmra.mrb[0].mxu0 %v513
  %v581 = vpop.f32.mrb[0].mxu0
  %v582 = vadd.f32 0.0, %v581
  %v583 = vpop.f32.mrb[0].mxu0
  %584 = vdwg.mxu0
  %v586 = vsel %vm78, %v511, 0
  %588 = vmatprep.subr.mxu0 0.0
  %589 = vmatpush1.msra.mxu0 %v298
  %590 = vmatprep.subr.mxu0 0.0
  %591 = vmatpush1.msra.mxu0 %v299
  %592 = vmatprep.subr.mxu0 0.0
  %593 = vmatpush1.msra.mxu0 %v300
  %594 = vmatprep.subr.mxu0 0.0
  %595 = vmatpush1.msra.mxu0 0.0
  %596 = vmatprep.subr.mxu0 0.0
  %597 = vmatpush1.msra.mxu0 0.0
  %598 = vmatprep.subr.mxu0 0.0
  %599 = vmatpush1.msra.mxu0 0.0
  %600 = vmatprep.subr.mxu0 0.0
  %601 = vmatpush1.msra.mxu0 0.0
  %602 = vmatprep.subr.mxu0 0.0
  %603 = vmatpush1.msra.mxu0 0.0
  %604 = vmatprep.subr.mxu0 0.0
  %605 = vmatpush1.msra.mxu0 0.0
  %606 = vmatprep.subr.mxu0 0.0
  %607 = vmatpush1.msra.mxu0 0.0
  %608 = vmatprep.subr.mxu0 0.0
  %609 = vmatpush1.msra.mxu0 0.0
  %610 = vmatprep.subr.mxu0 0.0
  %611 = vmatpush1.msra.mxu0 0.0
  %612 = vmatprep.subr.mxu0 0.0
  %613 = vmatpush1.msra.mxu0 0.0
  %614 = vmatprep.subr.mxu0 0.0
  %615 = vmatpush1.msra.mxu0 0.0
  %616 = vmatprep.subr.mxu0 0.0
  %617 = vmatpush1.msra.mxu0 0.0
  %618 = vmatprep.subr.mxu0 0.0
  %619 = vmatpush1.msra.mxu0 0.0
  %620 = vmatprep.subr.mxu0 0.0
  %621 = vmatpush1.msra.mxu0 0.0
  %622 = vmatprep.subr.mxu0 0.0
  %623 = vmatpush1.msra.mxu0 0.0
  %624 = vmatprep.subr.mxu0 0.0
  %625 = vmatpush1.msra.mxu0 0.0
  %626 = vmatprep.subr.mxu0 0.0
  %627 = vmatpush1.msra.mxu0 0.0
  %628 = vmatprep.subr.mxu0 0.0
  %629 = vmatpush1.msra.mxu0 0.0
  %630 = vmatprep.subr.mxu0 0.0
  %631 = vmatpush1.msra.mxu0 0.0
  %632 = vmatprep.subr.mxu0 0.0
  %633 = vmatpush1.msra.mxu0 0.0
  %634 = vmatprep.subr.mxu0 0.0
  %635 = vmatpush1.msra.mxu0 0.0
  %636 = vmatprep.subr.mxu0 0.0
  %637 = vmatpush1.msra.mxu0 0.0
  %638 = vmatprep.subr.mxu0 0.0
  %639 = vmatpush1.msra.mxu0 0.0
  %640 = vmatprep.subr.mxu0 0.0
  %641 = vmatpush1.msra.mxu0 0.0
  %642 = vmatprep.subr.mxu0 0.0
  %643 = vmatpush1.msra.mxu0 0.0
  %644 = vmatprep.subr.mxu0 0.0
  %645 = vmatpush1.msra.mxu0 0.0
  %646 = vmatprep.subr.mxu0 0.0
  %647 = vmatpush1.msra.mxu0 0.0
  %648 = vmatprep.subr.mxu0 0.0
  %649 = vmatpush1.msra.mxu0 0.0
  %650 = vmatprep.subr.mxu0 0.0
  %651 = vmatpush1.msra.mxu0 0.0
  %652 = vmatprep.mubr.f32.mxu0 0.0
  %653 = vmatmul.mubr.f32.gmra.mrb[0].mxu0 %v586
  %v654 = vpop.f32.mrb[0].mxu0
  %v655 = vadd.f32 0.0, %v654
  %v656 = vpop.f32.mrb[0].mxu0
  %657 = vdwg.mxu0
  %v658 = vlaneseq
  %v659 = vshrl.u32 %v658, 7
  %v660 = vsub.s32 0, %v659
  %v661 = vrot.slane %v582, %v660
  %v662 = vmul.f32 %v136, %v661
  %v663 = vmul.f32 %v139, %v661
  %v664 = vmul.f32 %v144, %v661
  %v665 = vmul.f32 %v147, %v661
  %v666 = vmul.f32 %v152, %v661
  %v667 = vmul.f32 %v155, %v661
  %v668 = vmul.f32 %v160, %v661
  %v669 = vmul.f32 %v163, %v661
  %v670 = vmul.f32 %v168, %v661
  %v671 = vmul.f32 %v171, %v661
  %v672 = vmul.f32 %v176, %v661
  %v673 = vmul.f32 %v179, %v661
  %v674 = vlaneseq
  %v675 = vshrl.u32 %v674, 7
  %v676 = vsub.s32 0, %v675
  %v677 = vrot.slane %v655, %v676
  %v678 = vadd.f32 %v662, %v677
  %v679 = vadd.f32 %v663, %v677
  %v680 = vadd.f32 %v664, %v677
  %v681 = vadd.f32 %v665, %v677
  %v682 = vadd.f32 %v666, %v677
  %v683 = vadd.f32 %v667, %v677
  %v684 = vadd.f32 %v668, %v677
  %v685 = vadd.f32 %v669, %v677
  %v686 = vadd.f32 %v670, %v677
  %v687 = vadd.f32 %v671, %v677
  %v688 = vadd.f32 %v672, %v677
  %v689 = vadd.f32 %v673, %v677
  %v690 = vmax.f32 %v678, 0.0
  %v691 = vmax.f32 %v679, 0.0
  %v692 = vmax.f32 %v680, 0.0
  %v693 = vmax.f32 %v681, 0.0
  %v694 = vmax.f32 %v682, 0.0
  %v695 = vmax.f32 %v683, 0.0
  %v696 = vmax.f32 %v684, 0.0
  %v697 = vmax.f32 %v685, 0.0
  %v698 = vmax.f32 %v686, 0.0
  %v699 = vmax.f32 %v687, 0.0
  %v700 = vmax.f32 %v688, 0.0
  %v701 = vmax.f32 %v689, 0.0
  %702 = vst.msk [vmem:[%s6] sm:$0xff] %vm182, %v690
  %703 = vst.msk [vmem:[%s6 + $0x8] sm:$0xff] %vm182, %v691
  %704 = vst.msk [vmem:[%s6 + $0x10] sm:$0xff] %vm182, %v692
  %705 = vst.msk [vmem:[%s6 + $0x18] sm:$0xff] %vm182, %v693
  %706 = vst.msk [vmem:[%s6 + $0x20] sm:$0xff] %vm182, %v694
  %707 = vst.msk [vmem:[%s6 + $0x28] sm:$0xff] %vm182, %v695
  %708 = vst.msk [vmem:[%s6 + $0x30] sm:$0xff] %vm182, %v696
  %709 = vst.msk [vmem:[%s6 + $0x38] sm:$0xff] %vm182, %v697
  %710 = vst.msk [vmem:[%s6 + $0x40] sm:$0xff] %vm182, %v698
  %711 = vst.msk [vmem:[%s6 + $0x48] sm:$0xff] %vm182, %v699
  %712 = vst.msk [vmem:[%s6 + $0x50] sm:$0xff] %vm182, %v700
  %713 = vst.msk [vmem:[%s6 + $0x58] sm:$0xff] %vm182, %v701
  // Predicated region
  $region26: #{radar_block_forward.13} parent=0 // pred_check
    _
  $region27: #{radar_block_forward.13} parent=0 // pred_check_branch
    %715 = sbr.rel (0) target = $region29
  $region28: #{radar_block_forward.13} parent=0 // pred_region
    _
  $region29: #{radar_block_forward.13} parent=0 // pred_fallthru
    _
  // Predicated region
  $region30: #{radar_block_forward.13} parent=0 // pred_check
    _
  $region31: #{radar_block_forward.13} parent=0 // pred_check_branch
    %717 = sbr.rel (0) target = $region33
  $region32: #{radar_block_forward.13} parent=0 // pred_region
    _
  $region33: #{radar_block_forward.13} parent=0 // pred_fallthru
    _

</llo_original>
